<compile_context>
chip_gen: v7x
topology: tpu7x:2x2x1
jax: 0.10.0
libtpu: 0.0.40
codegen_flags: <defaults>
</compile_context>

<pallas_src>
import functools

import jax
import jax.numpy as jnp
from jax import lax
from jax.experimental import pallas as pl
from jax.experimental.pallas import tpu as pltpu


# ----------------------------------------------------------------------------- kernel
def _mask_contextual_kernel(xn_ref, yn_ref, mask_ref, out_ref, colmax_ref,
                            *, band_width, hw, exp_dtype):
    # xn_ref    : (1, TILE_I, C) bf16  pre-normalized "x" rows (torch arg `pred`), lane = C
    # yn_ref    : (1, C, HW)     bf16  pre-normalized "y" cols (torch arg `target`), lane = HW
    # mask_ref  : (1, 1, HW)     f32   bilinearly resized occlusion mask (y's spatial grid)
    # out_ref   : (1, 1, 1)      f32   per-sample -log contextual similarity
    # colmax_ref: (1, HW)        f32   VMEM scratch: running max over rows i of cx[i, j]
    i = pl.program_id(1)

    @pl.when(i == 0)
    def _init():
        colmax_ref[...] = jnp.zeros_like(colmax_ref)      # cx >= 0, so 0 is a safe identity

    xn = xn_ref[0]                                         # (TILE_I, C) bf16
    yn = yn_ref[0]                                         # (C, HW)     bf16

    # Cosine similarity on the MXU in its native orientation: LHS contracts on the lane axis
    # (C last), RHS contracts on the sublane axis (C first); f32 accumulation.
    sim = jnp.dot(xn, yn, preferred_element_type=jnp.float32)          # (TILE_I, HW)

    # torch: dist = 1 - sim; dist_min = min_j dist = 1 - rowmax; dist_tilde = dist/(dist_min+1e-5);
    # w = exp((1 - dist_tilde)/h); cx = w / sum_j w.  The row softmax is shift invariant, so use
    # logits = (sim - rowmax) * r with r = 1/((dist_min+1e-5)*h); logits <= 0 by construction
    # (rowmax is the max of the same f32 values), so no clamp on the full tile and no overflow.
    rowmax = jnp.max(sim, axis=-1, keepdims=True)                      # (TILE_I, 1)
    dist_min = jnp.maximum(1.0 - rowmax, 0.0)                          # clamp bf16 overshoot only
    r = pl.reciprocal((dist_min + 1e-5) * jnp.float32(band_width), approx=True)
    logits = (sim - rowmax) * r                                        # (TILE_I, HW), <= 0

    # O(HW^2) transcendentals land on the single EUP: bf16 exp on v6e/v7x, f32 on v5e.
    # Row-sum accumulation and its reciprocal stay exact in f32 (only (TILE_I, 1) values).
    w = jnp.exp(logits.astype(exp_dtype))                              # (TILE_I, HW)
    rowsum = jnp.sum(w.astype(jnp.float32), axis=-1, keepdims=True)    # >= 1 (exp(0) term)
    inv_rowsum = 1.0 / rowsum                                          # exact reciprocal

    # cx = w / rowsum fused directly into the running column-max over rows i.
    colmax_ref[...] = jnp.maximum(
        colmax_ref[...],
        jnp.max(w.astype(jnp.float32) * inv_rowsum, axis=0, keepdims=True))   # (1, HW)

    @pl.when(i == pl.num_programs(1) - 1)
    def _finalize():
        # torch: mean over the full H*W (NOT mask.sum()), then -log(mean + 1e-5).
        cx_mean = jnp.sum(colmax_ref[...] * mask_ref[0]) / jnp.float32(hw)
        out_ref[...] = jnp.reshape(-jnp.log(cx_mean + 1e-5), (1, 1, 1))


# ----------------------------------------------------------------------------- sizing
def _vmem_budget():
    """(row-tile working-set budget, vmem_limit_bytes), TPU-generation aware."""
    kind = ""
    try:
        kind = jax.devices()[0].device_kind.lower()
    except Exception:
        pass
    cap = None
    try:
        cap = int(pltpu.get_tpu_info().vmem_capacity_bytes)
    except Exception:
        pass
    is_v7 = "7" in kind
    big_vmem = (cap is not None and cap >= 100 * 2 ** 20) or any(v in kind for v in ("v5", "v6"))
    if big_vmem and not is_v7:
        # v5e / v6e: 128 MiB physical VMEM per core -> large tiles, generous scoped limit.
        return 80 * 2 ** 20, 100 * 2 ** 20
    # v7x (64 MiB physical per TC) or unknown generation: leave headroom for Mosaic temps.
    return 34 * 2 ** 20, 52 * 2 ** 20


def _default_exp_dtype():
    """bf16 exp only where the chip has a bf16 EUP (v6e/v7x); f32 on v5e and older."""
    try:
        kind = jax.devices()[0].device_kind.lower()
    except Exception:
        return jnp.float32
    if any(v in kind for v in ("v2", "v3", "v4", "v5")):
        return jnp.float32
    return jnp.bfloat16


def _pick_row_tile(hw, c, budget_bytes):
    """Largest row tile (multiple of 128 dividing HW, else HW) whose working set fits budget."""
    def est(t):
        return int(3.5 * t * hw * 4        # sim / logits / w / fused-cx live temps + slack
                   + 2 * t * c * 2         # xn row tile, bf16, double-buffered
                   + 2 * c * hw * 2        # yn, bf16, double-buffered (resident per sample)
                   + 4 * hw * 4)           # colmax scratch + mask + misc
    if est(hw) <= budget_bytes:
        return hw
    cands = [t for t in range(128, hw, 128) if hw % t == 0]
    for t in sorted(cands, reverse=True):
        if est(t) <= budget_bytes:
            return t
    return cands[0] if cands else hw


# ----------------------------------------------------------------------------- wrapper
def mask_contextual_loss_pallas(pred_feat, target_feat, mask, band_width=0.5,
                                row_tile=None, exp_dtype=None):
    """pred_feat, target_feat: (N, C, H, W); mask: (N, Hm, Wm).

    Matches torch mask_contextual_loss(pred, target, mask): `pred_feat` indexes the rows of
    the HW x HW similarity matrix (max is taken over them), `target_feat` supplies y_mu and
    the columns (masked mean over them, divided by H*W).  Returns per-sample loss, shape (N,)."""
    N, C, H, W = pred_feat.shape
    HW = H * W
    if exp_dtype is None:
        exp_dtype = _default_exp_dtype()

    # F.interpolate(mask[:, None], size=(H, W), mode='bilinear', align_corners=True)
    mask_r = _bilinear_resize_align_corners(mask.astype(jnp.float32), H, W).reshape(N, 1, HW)

    # Pre-normalize both feature maps in XLA (O(N*C*HW) — negligible vs the O(HW^2*C) matmul).
    y_mu = jnp.mean(target_feat.astype(jnp.float32), axis=(0, 2, 3), keepdims=True)
    xc = pred_feat.astype(jnp.float32) - y_mu
    yc = target_feat.astype(jnp.float32) - y_mu
    xn = xc * lax.rsqrt(jnp.maximum(jnp.sum(xc * xc, axis=1, keepdims=True), 1e-24))
    yn = yc * lax.rsqrt(jnp.maximum(jnp.sum(yc * yc, axis=1, keepdims=True), 1e-24))
    # x goes in as (N, HW, C): the kernel matmul is (TILE_I, C) x (C, HW) — native MXU feed.
    xn = jnp.transpose(xn.reshape(N, C, HW), (0, 2, 1)).astype(jnp.bfloat16)   # (N, HW, C)
    yn = yn.reshape(N, C, HW).astype(jnp.bfloat16)                             # (N, C, HW)

    budget, vmem_limit = _vmem_budget()
    tile_i = _pick_row_tile(HW, C, budget) if row_tile is None else int(row_tile)
    assert HW % tile_i == 0, "row tile must divide H*W"
    n_i = HW // tile_i

    kernel = functools.partial(_mask_contextual_kernel, band_width=float(band_width),
                               hw=HW, exp_dtype=exp_dtype)
    out = pl.pallas_call(
        kernel,
        out_shape=jax.ShapeDtypeStruct((N, 1, 1), jnp.float32),
        grid_spec=pltpu.PrefetchScalarGridSpec(
            num_scalar_prefetch=0,
            grid=(N, n_i),
            in_specs=[
                pl.BlockSpec((1, tile_i, C), lambda n, i: (n, i, 0)),  # xn row tile
                pl.BlockSpec((1, C, HW), lambda n, i: (n, 0, 0)),      # yn (resident per sample)
                pl.BlockSpec((1, 1, HW), lambda n, i: (n, 0, 0)),      # mask
            ],
            out_specs=pl.BlockSpec((1, 1, 1), lambda n, i: (n, 0, 0)),
            scratch_shapes=[pltpu.VMEM((1, HW), jnp.float32)],         # running column-max of cx
        ),
        compiler_params=pltpu.CompilerParams(
            dimension_semantics=("parallel", "arbitrary"),   # batch across TCs on v7x
            vmem_limit_bytes=vmem_limit,
        ),
    )(xn, yn, mask_r)
    # TODO(synk): for v7x with N==1 (or odd N), a second parallel split over the column (j)
    # axis with flash-style partial row-sums would keep both TensorCores busy.
    return out.reshape(N)


# ----------------------------------------------------------------------------- glue
def _bilinear_resize_align_corners(img, out_h, out_w):
    """Bilinear resize matching F.interpolate(..., align_corners=True). img: (N, H, W)."""
    N, H, W = img.shape
    if out_h == H and out_w == W:
        return img
    ys = jnp.linspace(0.0, H - 1.0, out_h) if out_h > 1 else jnp.zeros((out_h,), jnp.float32)
    xs = jnp.linspace(0.0, W - 1.0, out_w) if out_w > 1 else jnp.zeros((out_w,), jnp.float32)
    y0 = jnp.floor(ys).astype(jnp.int32)
    x0 = jnp.floor(xs).astype(jnp.int32)
    y1 = jnp.minimum(y0 + 1, H - 1)
    x1 = jnp.minimum(x0 + 1, W - 1)
    wy = (ys - y0.astype(ys.dtype))[None, :, None]
    wx = (xs - x0.astype(xs.dtype))[None, None, :]
    Ia = img[:, y0][:, :, x0]
    Ib = img[:, y0][:, :, x1]
    Ic = img[:, y1][:, :, x0]
    Id = img[:, y1][:, :, x1]
    top = Ia * (1.0 - wx) + Ib * wx
    bot = Ic * (1.0 - wx) + Id * wx
    return top * (1.0 - wy) + bot * wy


def _mask_contextual_loss_ref(x, y, mask, band_width=0.5):
    """Pure-JAX f32 reference mirroring the torch mask_contextual_loss (cosine)."""
    N, C, H, W = x.shape
    m = _bilinear_resize_align_corners(mask.astype(jnp.float32), H, W).reshape(N, 1, H * W)
    y_mu = jnp.mean(y, axis=(0, 2, 3), keepdims=True)
    xc = (x - y_mu).reshape(N, C, -1)
    yc = (y - y_mu).reshape(N, C, -1)
    xn = xc / jnp.maximum(jnp.linalg.norm(xc, axis=1, keepdims=True), 1e-12)
    yn = yc / jnp.maximum(jnp.linalg.norm(yc, axis=1, keepdims=True), 1e-12)
    sim = jnp.einsum("nci,ncj->nij", xn, yn)
    dist = 1.0 - sim
    dist_min = jnp.min(dist, axis=2, keepdims=True)
    dist_tilde = dist / (dist_min + 1e-5)
    w = jnp.exp((1.0 - dist_tilde) / band_width)
    cx = w / jnp.sum(w, axis=2, keepdims=True)
    cx = jnp.max(cx, axis=1).reshape(N, 1, H * W) * m
    cx_mean = jnp.mean(cx, axis=(1, 2))
    return -jnp.log(cx_mean + 1e-5)


class _ProxyVGGFeatureExtractor:
    # TODO(synk): stand-in for VGGFeatureExtractor(['conv4_4'], vgg19) — pretrained VGG weights
    # are unavailable in-script; a single deterministic 3x3 stride-2 conv + ReLU is used instead.
    # Note: with small C (64 here) the kernel is EUP/vector-store bound, not MXU bound; no C
    # padding is done (it would only add FLOPs).
    def __init__(self, in_ch=3, out_ch=64, key=None):
        if key is None:
            key = jax.random.PRNGKey(42)
        kw, kb = jax.random.split(key)
        self.weight = jax.random.normal(kw, (out_ch, in_ch, 3, 3), jnp.float32) * 0.1
        self.bias = jax.random.normal(kb, (out_ch,), jnp.float32) * 0.1

    def __call__(self, x):  # x: (N, 3, H, W) NCHW
        y = lax.conv_general_dilated(
            x, self.weight, window_strides=(2, 2), padding=((1, 1), (1, 1)),
            dimension_numbers=("NCHW", "OIHW", "NCHW"))
        y = y + self.bias[None, :, None, None]
        return {"conv4_4": jnp.maximum(y, 0.0)}


class MaskContextualLoss:
    """JAX/Pallas port of basicsr MaskContextualLoss (loss_type='cosine', reduction='mean')."""

    def __init__(self, band_width=0.5, loss_type="cosine", use_vgg=True,
                 vgg_layer="conv4_4", loss_weight=1.0, reduction="mean",
                 mask_type="flow", alpha=0.01, beta=10):
        if reduction != "mean":
            raise ValueError(f"Unsupported reduction mode: {reduction}")
        if loss_type != "cosine":
            raise ValueError(f"Unsupported loss mode: {loss_type}")
        if mask_type != "flow":
            raise ValueError(f"Unsupported mask type: {mask_type}")
        assert band_width > 0, "band_width parameter must be positive."
        self.band_width = band_width
        self.loss_weight = loss_weight
        self.alpha = alpha
        self.beta = beta
        # TODO(synk): FlowGenerator (pretrained PWC-Net) + flow_warp have no in-script
        # equivalent; mask_occlusion below uses the same |.|-norm consistency condition on RGB
        # diffs as a deterministic proxy for the flow consistency check.
        if use_vgg:
            self.vgg_model = _ProxyVGGFeatureExtractor(out_ch=64)

    def mask_occlusion(self, pred, target, forward=True):
        diff = pred - target
        left = jnp.sqrt(jnp.sum(diff * diff, axis=1))                        # (N, H, W)
        right = self.alpha * (jnp.sqrt(jnp.sum(pred * pred, axis=1)) +
                              jnp.sqrt(jnp.sum(target * target, axis=1))) + self.beta
        return (left < right).astype(jnp.float32)

    def forward(self, pred, target, weight=None, **kwargs):
        assert hasattr(self, "vgg_model"), "Please specify VGG model."
        assert pred.shape[1] == 3 and target.shape[1] == 3, "VGG model takes 3 channel images."
        pred_features = self.vgg_model(pred)
        target_features = self.vgg_model(lax.stop_gradient(target))
        occlusion_mask = lax.stop_gradient(self.mask_occlusion(pred, target))
        cx_loss = 0.0
        for k in pred_features.keys():
            per_sample = mask_contextual_loss_pallas(
                target_features[k], pred_features[k], occlusion_mask,
                band_width=self.band_width)
            # weighted_loss with weight=None, reduction='mean'
            cx_loss = cx_loss + jnp.mean(per_sample)
        return cx_loss * self.loss_weight

    __call__ = forward


if __name__ == "__main__":
    key = jax.random.PRNGKey(0)
    k1, k2, k3, k4 = jax.random.split(key, 4)

    # 1) direct kernel test: compare against the pure-JAX f32 reference and check that the
    #    row-tiled path matches the single-tile path.
    Nf, Cf, Hf, Wf = 2, 64, 16, 16
    xf = jax.random.normal(k3, (Nf, Cf, Hf, Wf), jnp.float32)
    yf = jax.random.normal(k4, (Nf, Cf, Hf, Wf), jnp.float32)
    mk = (jax.random.uniform(k1, (Nf, Hf, Wf)) > 0.3).astype(jnp.float32)

    l_ref = jax.block_until_ready(_mask_contextual_loss_ref(xf, yf, mk, band_width=0.5))
    l_full = jax.block_until_ready(
        mask_contextual_loss_pallas(xf, yf, mk, band_width=0.5, row_tile=Hf * Wf))
    l_tile = jax.block_until_ready(
        mask_contextual_loss_pallas(xf, yf, mk, band_width=0.5, row_tile=128))
    assert l_full.shape == (Nf,) and bool(jnp.all(jnp.isfinite(l_full)))
    assert bool(jnp.all(jnp.isfinite(l_tile)))
    assert bool(jnp.allclose(l_full, l_tile, rtol=1e-3, atol=1e-3))      # tiling invariance
    assert bool(jnp.allclose(l_full, l_ref, rtol=2e-2, atol=5e-2))       # vs f32 reference

    # 2) end-to-end module test (proxy VGG + proxy occlusion mask).
    N, Cimg, Himg, Wimg = 2, 3, 32, 32
    pred = jax.random.uniform(k1, (N, Cimg, Himg, Wimg), jnp.float32)
    target = jax.random.uniform(k2, (N, Cimg, Himg, Wimg), jnp.float32)
    loss_fn = MaskContextualLoss(band_width=0.5)
    loss = jax.block_until_ready(loss_fn(pred, target))
    assert loss.shape == () and bool(jnp.isfinite(loss))

    print("KERNEL_OK")
</pallas_src>

<mosaic_0001>
module attributes {stable_mosaic.version = 11 : i64} {
  func.func @_mask_contextual_kernel(%arg0: i32, %arg1: i32, %arg2: memref<1x256x64xbf16, #tpu.memory_space<vmem>>, %arg3: memref<1x64x256xbf16, #tpu.memory_space<vmem>>, %arg4: memref<1x1x256xf32, #tpu.memory_space<vmem>>, %arg5: memref<1x1x1xf32, #tpu.memory_space<vmem>>, %arg6: memref<1x256xf32, #tpu.memory_space<vmem>>) attributes {dimension_semantics = [#tpu.dimension_semantics<parallel>, #tpu.dimension_semantics<arbitrary>], iteration_bounds = array<i64: 2, 1>, scalar_prefetch = 0 : i64, scratch_operands = 1 : i64, tpu.core_type = #tpu.core_type<tc>, window_params = [{transform_indices = @transform_0, window_bounds = array<i64: 1, 256, 64>}, {transform_indices = @transform_1, window_bounds = array<i64: 1, 64, 256>}, {transform_indices = @transform_2, window_bounds = array<i64: 1, 1, 256>}, {transform_indices = @transform_3, window_bounds = array<i64: 1, 1, 1>}]} {
    %c0_i32 = arith.constant 0 : i32
    %0 = arith.cmpi eq, %arg1, %c0_i32 : i32
    %1 = arith.extui %0 : i1 to i32
    %c0_i32_0 = arith.constant 0 : i32
    %2 = arith.cmpi ne, %1, %c0_i32_0 : i32
    scf.if %2 {
      %cst_20 = arith.constant 0.000000e+00 : f32
      %41 = vector.broadcast %cst_20 : f32 to vector<1x256xf32>
      %c0_21 = arith.constant 0 : index
      %c0_22 = arith.constant 0 : index
      %42 = vector.load %arg6[%c0_21, %c0_22] : memref<1x256xf32, #tpu.memory_space<vmem>>, vector<1x256xf32>
      tpu.vector_store %arg6[%c0_21, %c0_22], %41 {strides = array<i32>} : memref<1x256xf32, #tpu.memory_space<vmem>>, vector<1x256xf32>,
    } else {
    }
    %c0 = arith.constant 0 : index
    %c0_1 = arith.constant 0 : index
    %c0_2 = arith.constant 0 : index
    %3 = vector.load %arg2[%c0, %c0_1, %c0_2] : memref<1x256x64xbf16, #tpu.memory_space<vmem>>, vector<1x256x64xbf16>
    %4 = vector.shape_cast %3 : vector<1x256x64xbf16> to vector<256x64xbf16>
    %c0_3 = arith.constant 0 : index
    %c0_4 = arith.constant 0 : index
    %c0_5 = arith.constant 0 : index
    %5 = vector.load %arg3[%c0_3, %c0_4, %c0_5] : memref<1x64x256xbf16, #tpu.memory_space<vmem>>, vector<1x64x256xbf16>
    %6 = vector.shape_cast %5 : vector<1x64x256xbf16> to vector<64x256xbf16>
    %cst = arith.constant dense<0.000000e+00> : vector<256x256xf32>
    %7 = tpu.matmul %4, %6, %cst {dimension_numbers = #tpu.dot_dimension_numbers<[1], [0], [0], [1], [0, 0, 1, 1], [], []>} : vector<256x64xbf16>, vector<64x256xbf16>, vector<256x256xf32> -> vector<256x256xf32>
    %cst_6 = arith.constant dense<0xFF800000> : vector<256xf32>
    %8 = vector.multi_reduction <maximumf>, %7, %cst_6 [1] : vector<256x256xf32> to vector<256xf32>
    %9 = vector.shape_cast %8 : vector<256xf32> to vector<256x1xf32>
    %cst_7 = arith.constant 1.000000e+00 : f32
    %10 = vector.broadcast %cst_7 : f32 to vector<256x1xf32>
    %11 = arith.subf %10, %9 : vector<256x1xf32>
    %cst_8 = arith.constant 0.000000e+00 : f32
    %12 = vector.broadcast %cst_8 : f32 to vector<256x1xf32>
    %13 = arith.maximumf %11, %12 : vector<256x1xf32>
    %cst_9 = arith.constant 9.99999974E-6 : f32
    %14 = vector.broadcast %cst_9 : f32 to vector<256x1xf32>
    %15 = arith.addf %13, %14 : vector<256x1xf32>
    %cst_10 = arith.constant 5.000000e-01 : f32
    %16 = vector.broadcast %cst_10 : f32 to vector<256x1xf32>
    %17 = arith.mulf %15, %16 : vector<256x1xf32>
    %18 = tpu.reciprocal %17 {approx = true} : vector<256x1xf32> -> vector<256x1xf32>
    %19 = vector.broadcast %9 : vector<256x1xf32> to vector<256x256xf32>
    %20 = arith.subf %7, %19 : vector<256x256xf32>
    %21 = vector.broadcast %18 : vector<256x1xf32> to vector<256x256xf32>
    %22 = arith.mulf %20, %21 : vector<256x256xf32>
    %23 = arith.truncf %22 : vector<256x256xf32> to vector<256x256xbf16>
    %24 = math.exp %23 : vector<256x256xbf16>
    %25 = arith.extf %24 : vector<256x256xbf16> to vector<256x256xf32>
    %cst_11 = arith.constant dense<0.000000e+00> : vector<256xf32>
    %26 = vector.multi_reduction <add>, %25, %cst_11 [1] : vector<256x256xf32> to vector<256xf32>
    %27 = vector.shape_cast %26 : vector<256xf32> to vector<256x1xf32>
    %cst_12 = arith.constant 1.000000e+00 : f32
    %28 = vector.broadcast %cst_12 : f32 to vector<256x1xf32>
    %29 = arith.divf %28, %27 : vector<256x1xf32>
    %c0_13 = arith.constant 0 : index
    %c0_14 = arith.constant 0 : index
    %30 = vector.load %arg6[%c0_13, %c0_14] : memref<1x256xf32, #tpu.memory_space<vmem>>, vector<1x256xf32>
    %31 = arith.extf %24 : vector<256x256xbf16> to vector<256x256xf32>
    %32 = vector.broadcast %29 : vector<256x1xf32> to vector<256x256xf32>
    %33 = arith.mulf %31, %32 : vector<256x256xf32>
    %cst_15 = arith.constant dense<0xFF800000> : vector<256xf32>
    %34 = vector.multi_reduction <maximumf>, %33, %cst_15 [0] : vector<256x256xf32> to vector<256xf32>
    %35 = vector.shape_cast %34 : vector<256xf32> to vector<1x256xf32>
    %36 = arith.maximumf %30, %35 : vector<1x256xf32>
    %c0_16 = arith.constant 0 : index
    %c0_17 = arith.constant 0 : index
    %37 = vector.load %arg6[%c0_16, %c0_17] : memref<1x256xf32, #tpu.memory_space<vmem>>, vector<1x256xf32>
    tpu.vector_store %arg6[%c0_16, %c0_17], %36 {strides = array<i32>} : memref<1x256xf32, #tpu.memory_space<vmem>>, vector<1x256xf32>,
    %c0_i32_18 = arith.constant 0 : i32
    %38 = arith.cmpi eq, %arg1, %c0_i32_18 : i32
    %39 = arith.extui %38 : i1 to i32
    %c0_i32_19 = arith.constant 0 : i32
    %40 = arith.cmpi ne, %39, %c0_i32_19 : i32
    scf.if %40 {
      %c0_20 = arith.constant 0 : index
      %c0_21 = arith.constant 0 : index
      %41 = vector.load %arg6[%c0_20, %c0_21] : memref<1x256xf32, #tpu.memory_space<vmem>>, vector<1x256xf32>
      %c0_22 = arith.constant 0 : index
      %c0_23 = arith.constant 0 : index
      %c0_24 = arith.constant 0 : index
      %42 = vector.load %arg4[%c0_22, %c0_23, %c0_24] : memref<1x1x256xf32, #tpu.memory_space<vmem>>, vector<1x1x256xf32>
      %43 = vector.shape_cast %42 : vector<1x1x256xf32> to vector<1x256xf32>
      %44 = arith.mulf %41, %43 : vector<1x256xf32>
      %45 = vector.shape_cast %44 : vector<1x256xf32> to vector<1x1x256xf32>
      %cst_25 = arith.constant dense<0.000000e+00> : vector<1xf32>
      %46 = vector.multi_reduction <add>, %45, %cst_25 [1, 2] : vector<1x1x256xf32> to vector<1xf32>
      %47 = vector.shape_cast %46 : vector<1xf32> to vector<1x1x1xf32>
      %48 = vector.extract %47[0, 0, 0] : f32 from vector<1x1x1xf32>
      %cst_26 = arith.constant 2.560000e+02 : f32
      %49 = arith.divf %48, %cst_26 : f32
      %cst_27 = arith.constant 9.99999974E-6 : f32
      %50 = arith.addf %49, %cst_27 : f32
      %51 = math.log %50 : f32
      %cst_28 = arith.constant 0.000000e+00 : f32
      %52 = arith.subf %cst_28, %51 : f32
      %53 = vector.broadcast %52 : f32 to vector<1x1x1xf32>
      %c0_29 = arith.constant 0 : index
      %c0_30 = arith.constant 0 : index
      %c0_31 = arith.constant 0 : index
      %54 = vector.load %arg5[%c0_29, %c0_30, %c0_31] : memref<1x1x1xf32, #tpu.memory_space<vmem>>, vector<1x1x1xf32>
      tpu.vector_store %arg5[%c0_29, %c0_30, %c0_31], %53 {strides = array<i32>} : memref<1x1x1xf32, #tpu.memory_space<vmem>>, vector<1x1x1xf32>,
    } else {
    }
    return
  }
  func.func @transform_0(%arg0: i32, %arg1: i32) -> (i32, i32, i32) {
    %c0_i32 = arith.constant 0 : i32
    %c0_i32_0 = arith.constant 0 : i32
    return %arg0, %arg1, %c0_i32 : i32, i32, i32
  }
  func.func @transform_1(%arg0: i32, %arg1: i32) -> (i32, i32, i32) {
    %c0_i32 = arith.constant 0 : i32
    %c0_i32_0 = arith.constant 0 : i32
    %c0_i32_1 = arith.constant 0 : i32
    return %arg0, %c0_i32, %c0_i32_0 : i32, i32, i32
  }
  func.func @transform_2(%arg0: i32, %arg1: i32) -> (i32, i32, i32) {
    %c0_i32 = arith.constant 0 : i32
    %c0_i32_0 = arith.constant 0 : i32
    %c0_i32_1 = arith.constant 0 : i32
    return %arg0, %c0_i32, %c0_i32_0 : i32, i32, i32
  }
  func.func @transform_3(%arg0: i32, %arg1: i32) -> (i32, i32, i32) {
    %c0_i32 = arith.constant 0 : i32
    %c0_i32_0 = arith.constant 0 : i32
    %c0_i32_1 = arith.constant 0 : i32
    return %arg0, %c0_i32, %c0_i32_0 : i32, i32, i32
  }
}

</mosaic_0001>

<llo_original>
// kernel: tpu_custom_call.1
$region0: #{tpu_custom_call.1}
  #allocation0 [shape = 'u32[]', space=smem, size = 0x4, offset = 0x4, fixed_abs, tag = 'smem constant byte address 0x4 - core index']
  #allocation1 [shape = 'u32[144,128]{1,0:T(1,128)}', space=vmem, size = 0x12000, scoped, tag = 'internal scratch']
  #allocation2 [shape = 'f32[1,256]{1,0:T(1,128)}', space=vmem, size = 0x400, scoped, tag = 'scratch operand']
  %s0 = inlined_call_operand.vmem [shape: bf16[2,256,64], index: 0, kind: input, shape index: {}]
  %s1 = inlined_call_operand.vmem [shape: bf16[2,64,256], index: 1, kind: input, shape index: {}]
  %s2 = inlined_call_operand.vmem [shape: f32[2,1,256], index: 2, kind: input, shape index: {}]
  %s3 = inlined_call_operand.vmem [shape: f32[2,1,1], index: 3, kind: output, shape index: {}]
  %s4 = sld [smem:[#allocation0]]
  $region53: #{tpu_custom_call.1} parent=0
    _
  %s6 = ssub.s32 1, %s4
  %s7 = scalar_select 0, %s6, %s4
  loop: start=0, step=1, limit=4
  $region2: #{tpu_custom_call.1} parent=0 // loop_pre_header
    _
  $region3: #{tpu_custom_call.1} parent=0 // loop_header
    %s9 = sphi 0, %s13
    %p10 = scmp.ge.s32.totalorder %s9, 4
    %s16 = sphi 0, %s28
    %s17 = sphi 0, %s24
    %s18 = sphi 0, %s16
    %s19 = sphi 0, %s17
    %s20 = sphi 0, %s18
    %s21 = sphi 0, %s19
    %s33 = sphi 0, %s35
    %s36 = sphi 0, %s33
    %s37 = sphi 0, %s36
    %s53 = sphi 0, %s37
    %s59 = sphi 0, %s61
    %s62 = sphi 0, %s59
    %s63 = sphi 0, %s62
    %s79 = sphi 0, %s63
    %s85 = sphi 0, %s87
    %s88 = sphi 0, %s85
    %s89 = sphi 0, %s88
    %s105 = sphi 0, %s89
    %s111 = sphi 0, %s113
    %s114 = sphi 0, %s111
    %s115 = sphi 0, %s114
    %s131 = sphi 0, %s115
  $region4: #{tpu_custom_call.1} parent=0 // loop_header_branch
    %12 = sbr.rel (%p10) target = $region8
  $region5: #{tpu_custom_call.1} parent=0 // loop_body
    %s14 = ssub.s32 %s9, 1
    %s15 = ssub.s32 %s9, 2
    %s22 = sadd.s32 1, %s17
    %p23 = scmp.ge.s32.totalorder %s22, 1
    %s24 = scalar_select %p23, 0, %s22
    %s25 = sadd.s32 1, %s16
    %s26 = scalar_select %p23, %s25, %s16
    %p27 = scmp.ge.s32.totalorder %s26, 2
    %s28 = scalar_select %p27, 0, %s26
    %s29 = ssub.s32 %s16, %s28
    %s30 = ssub.s32 %s17, %s24
    %s31 = sor.u32 %s29, %s30
    %p32 = scmp.eq.s32.totalorder %s31, 0
    %s34 = sadd.s32 %s33, 1
    %s35 = scalar_select %p32, %s33, %s34
    %p38 = pneg %p32
    %p39 = scmp.eq.s32.totalorder %s9, 1
    %p40 = por %p38, %p39
    %p41 = scmp.ne.s32.totalorder %s33, %s36
    %p42 = scmp.eq.s32.totalorder %s9, 0
    %p43 = por %p41, %p42
    %p44 = scmp.ne.s32.totalorder %s33, %s36
    %p45 = scmp.eq.s32.totalorder %s14, 1
    %p46 = por %p44, %p45
    %p47 = scmp.ne.s32.totalorder %s36, %s37
    %p48 = scmp.eq.s32.totalorder %s14, 0
    %p49 = por %p47, %p48
    %p50 = scmp.ne.s32.totalorder %s36, %s37
    %p51 = scmp.eq.s32.totalorder %s15, 1
    %p52 = por %p50, %p51
    %p54 = scmp.ne.s32.totalorder %s37, %s53
    %p55 = scmp.eq.s32.totalorder %s15, 0
    %p56 = por %p54, %p55
    %s57 = ssub.s32 %s16, %s28
    %p58 = scmp.eq.s32.totalorder %s57, 0
    %s60 = sadd.s32 %s59, 1
    %s61 = scalar_select %p58, %s59, %s60
    %p64 = pneg %p58
    %p65 = scmp.eq.s32.totalorder %s9, 1
    %p66 = por %p64, %p65
    %p67 = scmp.ne.s32.totalorder %s59, %s62
    %p68 = scmp.eq.s32.totalorder %s9, 0
    %p69 = por %p67, %p68
    %p70 = scmp.ne.s32.totalorder %s59, %s62
    %p71 = scmp.eq.s32.totalorder %s14, 1
    %p72 = por %p70, %p71
    %p73 = scmp.ne.s32.totalorder %s62, %s63
    %p74 = scmp.eq.s32.totalorder %s14, 0
    %p75 = por %p73, %p74
    %p76 = scmp.ne.s32.totalorder %s62, %s63
    %p77 = scmp.eq.s32.totalorder %s15, 1
    %p78 = por %p76, %p77
    %p80 = scmp.ne.s32.totalorder %s63, %s79
    %p81 = scmp.eq.s32.totalorder %s15, 0
    %p82 = por %p80, %p81
    %s83 = ssub.s32 %s16, %s28
    %p84 = scmp.eq.s32.totalorder %s83, 0
    %s86 = sadd.s32 %s85, 1
    %s87 = scalar_select %p84, %s85, %s86
    %p90 = pneg %p84
    %p91 = scmp.eq.s32.totalorder %s9, 1
    %p92 = por %p90, %p91
    %p93 = scmp.ne.s32.totalorder %s85, %s88
    %p94 = scmp.eq.s32.totalorder %s9, 0
    %p95 = por %p93, %p94
    %p96 = scmp.ne.s32.totalorder %s85, %s88
    %p97 = scmp.eq.s32.totalorder %s14, 1
    %p98 = por %p96, %p97
    %p99 = scmp.ne.s32.totalorder %s88, %s89
    %p100 = scmp.eq.s32.totalorder %s14, 0
    %p101 = por %p99, %p100
    %p102 = scmp.ne.s32.totalorder %s88, %s89
    %p103 = scmp.eq.s32.totalorder %s15, 1
    %p104 = por %p102, %p103
    %p106 = scmp.ne.s32.totalorder %s89, %s105
    %p107 = scmp.eq.s32.totalorder %s15, 0
    %p108 = por %p106, %p107
    %s109 = ssub.s32 %s16, %s28
    %p110 = scmp.eq.s32.totalorder %s109, 0
    %s112 = sadd.s32 %s111, 1
    %s113 = scalar_select %p110, %s111, %s112
    %p116 = pneg %p110
    %p117 = scmp.eq.s32.totalorder %s9, 1
    %p118 = por %p116, %p117
    %p119 = scmp.ne.s32.totalorder %s111, %s114
    %p120 = scmp.eq.s32.totalorder %s9, 0
    %p121 = por %p119, %p120
    %p122 = scmp.ne.s32.totalorder %s111, %s114
    %p123 = scmp.eq.s32.totalorder %s14, 1
    %p124 = por %p122, %p123
    %p125 = scmp.ne.s32.totalorder %s114, %s115
    %p126 = scmp.eq.s32.totalorder %s14, 0
    %p127 = por %p125, %p126
    %p128 = scmp.ne.s32.totalorder %s114, %s115
    %p129 = scmp.eq.s32.totalorder %s15, 1
    %p130 = por %p128, %p129
    %p132 = scmp.ne.s32.totalorder %s115, %s131
    %p133 = scmp.eq.s32.totalorder %s15, 0
    %p134 = por %p132, %p133
    %p135 = scmp.le.s32.totalorder 1, %s9
    %p136 = scmp.lt.s32.totalorder %s9, 3
    %p137 = pnand %p135, %p136
    %p138 = pneg %p137
    // Predicated region
    $region9: #{tpu_custom_call.1} parent=5 // pred_check
      _
    $region10: #{tpu_custom_call.1} parent=5 // pred_check_branch
      %140 = sbr.rel (%p137) target = $region12
    $region11: #{tpu_custom_call.1} parent=5 // pred_region
      %s141 = ssub.s32 %s9, 1
    $region12: #{tpu_custom_call.1} parent=5 // pred_fallthru
      _
    %p142 = scmp.lt.s32.totalorder %s9, 2
    // Predicated region
    $region13: #{tpu_custom_call.1} parent=5 // pred_check
      %p143 = pneg %p142
    $region14: #{tpu_custom_call.1} parent=5 // pred_check_branch
      %145 = sbr.rel (%p143) target = $region16
    $region15: #{tpu_custom_call.1} parent=5 // pred_region
      // Predicated region
      $region17: #{tpu_custom_call.1} parent=15 // pred_check
        %p146 = pneg %p43
      $region18: #{tpu_custom_call.1} parent=15 // pred_check_branch
        %148 = sbr.rel (%p146) target = $region20
      $region19: #{tpu_custom_call.1} parent=15 // pred_region
        %s149 = smul.u32 32, %s17
        %p150 = scmp.lt.s32.totalorder %s16, 1
        %s151 = scalar_select %p150, %s16, 1
        %p152 = scmp.lt.s32.totalorder %s149, 31
        %s153 = scalar_select %p152, %s149, 31
        %s154 = smul.addr %s151, 32
        %s155 = sadd.s32 %s153, %s154
        %s156 = smul.addr %s155, 4
        %s157 = scalar_lea.vmem %s0, %s156
        %s158 = smul.u32 32, %s17
      $region20: #{tpu_custom_call.1} parent=15 // pred_fallthru
        _
      // Predicated region
      $region21: #{tpu_custom_call.1} parent=15 // pred_check
        %p159 = pneg %p69
      $region22: #{tpu_custom_call.1} parent=15 // pred_check_branch
        %161 = sbr.rel (%p159) target = $region24
      $region23: #{tpu_custom_call.1} parent=15 // pred_region
        %p162 = scmp.lt.s32.totalorder %s16, 1
        %s163 = scalar_select %p162, %s16, 1
        %s164 = smul.addr %s163, 16
        %s165 = smul.addr %s164, 4
        %s166 = scalar_lea.vmem %s1, %s165
      $region24: #{tpu_custom_call.1} parent=15 // pred_fallthru
        _
      // Predicated region
      $region25: #{tpu_custom_call.1} parent=15 // pred_check
        %p167 = pneg %p95
      $region26: #{tpu_custom_call.1} parent=15 // pred_check_branch
        %169 = sbr.rel (%p167) target = $region28
      $region27: #{tpu_custom_call.1} parent=15 // pred_region
        %p170 = scmp.lt.s32.totalorder %s16, 1
        %s171 = scalar_select %p170, %s16, 1
        %s172 = smul.addr %s171, 2
        %s173 = scalar_lea.vmem %s2, %s172
      $region28: #{tpu_custom_call.1} parent=15 // pred_fallthru
        _
    $region16: #{tpu_custom_call.1} parent=5 // pred_fallthru
      _
    %p174 = scmp.le.s32.totalorder 1, %s9
    %p175 = scmp.lt.s32.totalorder %s9, 3
    %p176 = pnand %p174, %p175
    %p177 = pneg %p176
    // Predicated region
    $region29: #{tpu_custom_call.1} parent=5 // pred_check
      _
    $region30: #{tpu_custom_call.1} parent=5 // pred_check_branch
      %179 = sbr.rel (%p176) target = $region32
    $region31: #{tpu_custom_call.1} parent=5 // pred_region
      %s180 = ssub.s32 %s9, 1
      %s181 = smul.u32 32, %s19
      %p182 = scmp.lt.s32.totalorder %s18, 1
      %s183 = scalar_select %p182, %s18, 1
      %p184 = scmp.lt.s32.totalorder %s181, 31
      %s185 = scalar_select %p184, %s181, 31
      %s186 = smul.addr %s183, 32
      %s187 = sadd.s32 %s185, %s186
      %s188 = smul.addr %s187, 4
      %s189 = scalar_lea.vmem %s0, %s188
      %p190 = pneg %p49
      %p191 = pneg %p46
      %p192 = scmp.lt.s32.totalorder %s18, 1
      %s193 = scalar_select %p192, %s18, 1
      %s194 = smul.addr %s193, 16
      %s195 = smul.addr %s194, 4
      %s196 = scalar_lea.vmem %s1, %s195
      %p197 = pneg %p75
      %p198 = pneg %p72
      %p199 = scmp.lt.s32.totalorder %s18, 1
      %s200 = scalar_select %p199, %s18, 1
      %s201 = smul.addr %s200, 2
      %s202 = scalar_lea.vmem %s2, %s201
      %p203 = pneg %p101
      %p204 = pneg %p98
      %p205 = pneg %p127
      %p206 = pneg %p124
      %p207 = scmp.lt.s32.totalorder %s18, 1
      %s208 = scalar_select %p207, %s18, 1
      %s209 = scalar_lea.vmem %s3, %s208
      %s210 = smul.u32 32, %s19
      %p211 = scmp.lt.s32.totalorder %s18, 1
      %s212 = scalar_select %p211, %s18, 1
      %p213 = scmp.lt.s32.totalorder %s210, 31
      %s214 = scalar_select %p213, %s210, 31
      %s215 = smul.addr %s212, 32
      %s216 = sadd.s32 %s214, %s215
      %s217 = smul.addr %s216, 4
      %s218 = scalar_lea.vmem %s0, %s217
      %s219 = smul.u32 32, %s19
      %p220 = scmp.lt.s32.totalorder %s18, 1
      %s221 = scalar_select %p220, %s18, 1
      %s222 = smul.addr %s221, 16
      %s223 = smul.addr %s222, 4
      %s224 = scalar_lea.vmem %s1, %s223
      %p225 = scmp.lt.s32.totalorder %s18, 1
      %s226 = scalar_select %p225, %s18, 1
      %s227 = smul.addr %s226, 2
      %s228 = scalar_lea.vmem %s2, %s227
      %p229 = scmp.lt.s32.totalorder %s18, 1
      %s230 = scalar_select %p229, %s18, 1
      %s231 = scalar_lea.vmem %s3, %s230
      %p233 = scmp.eq.s32.totalorder %s19, 0
      // Predicated region
      $region33: #{tpu_custom_call.1} parent=31 // pred_check
        %p234 = pneg %p233
      $region34: #{tpu_custom_call.1} parent=31 // pred_check_branch
        %236 = sbr.rel (%p234) target = $region36
      $region35: #{tpu_custom_call.1} parent=31 // pred_region
        %v237 = vlaneseq
        %vm238 = vcmp.ge.s32.totalorder %v237, 0
        %vm239 = vcmp.lt.s32.totalorder %v237, 256
        %vm240 = vmand %vm238, %vm239
        %241 = vst.msk [vmem:[#allocation2] sm:$0x3] %vm240, 0.0
      $region36: #{tpu_custom_call.1} parent=31 // pred_fallthru
        _
      %v242 = vld [vmem:[%s218] sm:$0xf]
      %v243 = vld [vmem:[%s218 + $0x4] sm:$0xf]
      %v244 = vld [vmem:[%s218 + $0x8] sm:$0xf]
      %v245 = vld [vmem:[%s218 + $0xc] sm:$0xf]
      %v246 = vld [vmem:[%s218 + $0x10] sm:$0xf]
      %v247 = vld [vmem:[%s218 + $0x14] sm:$0xf]
      %v248 = vld [vmem:[%s218 + $0x18] sm:$0xf]
      %v249 = vld [vmem:[%s218 + $0x1c] sm:$0xf]
      %v250 = vld [vmem:[%s218 + $0x20] sm:$0xf]
      %v251 = vld [vmem:[%s218 + $0x24] sm:$0xf]
      %v252 = vld [vmem:[%s218 + $0x28] sm:$0xf]
      %v253 = vld [vmem:[%s218 + $0x2c] sm:$0xf]
      %v254 = vld [vmem:[%s218 + $0x30] sm:$0xf]
      %v255 = vld [vmem:[%s218 + $0x34] sm:$0xf]
      %v256 = vld [vmem:[%s218 + $0x38] sm:$0xf]
      %v257 = vld [vmem:[%s218 + $0x3c] sm:$0xf]
      %v258 = vld [vmem:[%s218 + $0x40] sm:$0xf]
      %v259 = vld [vmem:[%s218 + $0x44] sm:$0xf]
      %v260 = vld [vmem:[%s218 + $0x48] sm:$0xf]
      %v261 = vld [vmem:[%s218 + $0x4c] sm:$0xf]
      %v262 = vld [vmem:[%s218 + $0x50] sm:$0xf]
      %v263 = vld [vmem:[%s218 + $0x54] sm:$0xf]
      %v264 = vld [vmem:[%s218 + $0x58] sm:$0xf]
      %v265 = vld [vmem:[%s218 + $0x5c] sm:$0xf]
      %v266 = vld [vmem:[%s218 + $0x60] sm:$0xf]
      %v267 = vld [vmem:[%s218 + $0x64] sm:$0xf]
      %v268 = vld [vmem:[%s218 + $0x68] sm:$0xf]
      %v269 = vld [vmem:[%s218 + $0x6c] sm:$0xf]
      %v270 = vld [vmem:[%s218 + $0x70] sm:$0xf]
      %v271 = vld [vmem:[%s218 + $0x74] sm:$0xf]
      %v272 = vld [vmem:[%s218 + $0x78] sm:$0xf]
      %v273 = vld [vmem:[%s218 + $0x7c] sm:$0xf]
      %v274 = vld [vmem:[%s224] sm:$0xff]
      %v275 = vld [vmem:[%s224 + $0x8] sm:$0xff]
      %v276 = vld [vmem:[%s224 + $0x10] sm:$0xff]
      %v277 = vld [vmem:[%s224 + $0x18] sm:$0xff]
      %v278 = vld [vmem:[%s224 + $0x20] sm:$0xff]
      %v279 = vld [vmem:[%s224 + $0x28] sm:$0xff]
      %v280 = vld [vmem:[%s224 + $0x30] sm:$0xff]
      %v281 = vld [vmem:[%s224 + $0x38] sm:$0xff]
      %v314 = vunpack.c.l.b16 %v242
      %v315 = vunpack.c.l.b16 %v243
      %v316 = vunpack.c.l.b16 %v244
      %v317 = vunpack.c.l.b16 %v245
      %v318 = vunpack.c.l.b16 %v246
      %v319 = vunpack.c.l.b16 %v247
      %v320 = vunpack.c.l.b16 %v248
      %v321 = vunpack.c.l.b16 %v249
      %v322 = vunpack.c.l.b16 %v250
      %v323 = vunpack.c.l.b16 %v251
      %v324 = vunpack.c.l.b16 %v252
      %v325 = vunpack.c.l.b16 %v253
      %v326 = vunpack.c.l.b16 %v254
      %v327 = vunpack.c.l.b16 %v255
      %v328 = vunpack.c.l.b16 %v256
      %v329 = vunpack.c.l.b16 %v257
      %v330 = vunpack.c.l.b16 %v258
      %v331 = vunpack.c.l.b16 %v259
      %v332 = vunpack.c.l.b16 %v260
      %v333 = vunpack.c.l.b16 %v261
      %v334 = vunpack.c.l.b16 %v262
      %v335 = vunpack.c.l.b16 %v263
      %v336 = vunpack.c.l.b16 %v264
      %v337 = vunpack.c.l.b16 %v265
      %v338 = vunpack.c.l.b16 %v266
      %v339 = vunpack.c.l.b16 %v267
      %v340 = vunpack.c.l.b16 %v268
      %v341 = vunpack.c.l.b16 %v269
      %v342 = vunpack.c.l.b16 %v270
      %v343 = vunpack.c.l.b16 %v271
      %v344 = vunpack.c.l.b16 %v272
      %v345 = vunpack.c.l.b16 %v273
      %v346 = vpack.c.b16 %v315, %v314
      %v347 = vpack.c.b16 %v317, %v316
      %v348 = vpack.c.b16 %v319, %v318
      %v349 = vpack.c.b16 %v321, %v320
      %v350 = vpack.c.b16 %v323, %v322
      %v351 = vpack.c.b16 %v325, %v324
      %v352 = vpack.c.b16 %v327, %v326
      %v353 = vpack.c.b16 %v329, %v328
      %v354 = vpack.c.b16 %v331, %v330
      %v355 = vpack.c.b16 %v333, %v332
      %v356 = vpack.c.b16 %v335, %v334
      %v357 = vpack.c.b16 %v337, %v336
      %v358 = vpack.c.b16 %v339, %v338
      %v359 = vpack.c.b16 %v341, %v340
      %v360 = vpack.c.b16 %v343, %v342
      %v361 = vpack.c.b16 %v345, %v344
      %v370 = vunpack.c.l.b16 %v274
      %v371 = vunpack.c.h.b16 %v274
      %v372 = vunpack.c.l.b16 %v275
      %v373 = vunpack.c.h.b16 %v275
      %v374 = vunpack.c.l.b16 %v276
      %v375 = vunpack.c.h.b16 %v276
      %v376 = vunpack.c.l.b16 %v277
      %v377 = vunpack.c.h.b16 %v277
      %v378 = vunpack.c.l.b16 %v278
      %v379 = vunpack.c.h.b16 %v278
      %v380 = vunpack.c.l.b16 %v279
      %v381 = vunpack.c.h.b16 %v279
      %v382 = vunpack.c.l.b16 %v280
      %v383 = vunpack.c.h.b16 %v280
      %v384 = vunpack.c.l.b16 %v281
      %v385 = vunpack.c.h.b16 %v281
      %v386 = vpack.c.b16 %v372, %v370
      %v387 = vpack.c.b16 %v373, %v371
      %v388 = vpack.c.b16 %v376, %v374
      %v389 = vpack.c.b16 %v377, %v375
      %v390 = vpack.c.b16 %v380, %v378
      %v391 = vpack.c.b16 %v381, %v379
      %v392 = vpack.c.b16 %v384, %v382
      %v393 = vpack.c.b16 %v385, %v383
      %vm402 = vcmask 523264
      %v404 = vsel %vm402, %v346, 0
      %v407 = vsel %vm402, %v347, 0
      %v410 = vsel %vm402, %v348, 0
      %v413 = vsel %vm402, %v349, 0
      %v416 = vsel %vm402, %v350, 0
      %v419 = vsel %vm402, %v351, 0
      %v422 = vsel %vm402, %v352, 0
      %v425 = vsel %vm402, %v353, 0
      %v428 = vsel %vm402, %v354, 0
      %v431 = vsel %vm402, %v355, 0
      %v434 = vsel %vm402, %v356, 0
      %v437 = vsel %vm402, %v357, 0
      %v440 = vsel %vm402, %v358, 0
      %v443 = vsel %vm402, %v359, 0
      %v446 = vsel %vm402, %v360, 0
      %v449 = vsel %vm402, %v361, 0
      %451 = vmatprep.subr.bf16.mxu0 %v387
      %452 = vmatpush1.bf16.msra.mxu0 %v386
      %453 = vmatprep.subr.bf16.mxu0 %v389
      %454 = vmatpush1.bf16.msra.mxu0 %v388
      %455 = vmatprep.subr.bf16.mxu0 %v391
      %456 = vmatpush1.bf16.msra.mxu0 %v390
      %457 = vmatprep.subr.bf16.mxu0 %v393
      %458 = vmatpush1.bf16.msra.mxu0 %v392
      %459 = vmatprep.subr.bf16.mxu0 0
      %460 = vmatpush1.bf16.msra.mxu0 0
      %461 = vmatprep.subr.bf16.mxu0 0
      %462 = vmatpush1.bf16.msra.mxu0 0
      %463 = vmatprep.subr.bf16.mxu0 0
      %464 = vmatpush1.bf16.msra.mxu0 0
      %465 = vmatprep.subr.bf16.mxu0 0
      %466 = vmatpush1.bf16.msra.mxu0 0
      %467 = vmatprep.subr.bf16.mxu0 0
      %468 = vmatpush1.bf16.msra.mxu0 0
      %469 = vmatprep.subr.bf16.mxu0 0
      %470 = vmatpush1.bf16.msra.mxu0 0
      %471 = vmatprep.subr.bf16.mxu0 0
      %472 = vmatpush1.bf16.msra.mxu0 0
      %473 = vmatprep.subr.bf16.mxu0 0
      %474 = vmatpush1.bf16.msra.mxu0 0
      %475 = vmatprep.subr.bf16.mxu0 0
      %476 = vmatpush1.bf16.msra.mxu0 0
      %477 = vmatprep.subr.bf16.mxu0 0
      %478 = vmatpush1.bf16.msra.mxu0 0
      %479 = vmatprep.subr.bf16.mxu0 0
      %480 = vmatpush1.bf16.msra.mxu0 0
      %481 = vmatprep.subr.bf16.mxu0 0
      %482 = vmatpush1.bf16.msra.mxu0 0
      %483 = vmatprep.mubr.bf16.mxu0 0
      %484 = vmatmul.mubr.bf16.gmra.mrb[0].mxu0 %v404
      %v485 = vpop.f32.mrb[0].mxu0
      %v486 = vadd.f32 0.0, %v485
      %v487 = vpop.f32.mrb[0].mxu0
      %v488 = vadd.f32 0.0, %v487
      %v489 = vpop.f32.mrb[0].mxu0
      %v490 = vadd.f32 0.0, %v489
      %v491 = vpop.f32.mrb[0].mxu0
      %v492 = vadd.f32 0.0, %v491
      %493 = vmatprep.mubr.bf16.mxu0 0
      %494 = vmatmul.mubr.bf16.gmra.mrb[0].mxu0 %v407
      %v495 = vpop.f32.mrb[0].mxu0
      %v496 = vadd.f32 0.0, %v495
      %v497 = vpop.f32.mrb[0].mxu0
      %v498 = vadd.f32 0.0, %v497
      %v499 = vpop.f32.mrb[0].mxu0
      %v500 = vadd.f32 0.0, %v499
      %v501 = vpop.f32.mrb[0].mxu0
      %v502 = vadd.f32 0.0, %v501
      %503 = vmatprep.mubr.bf16.mxu0 0
      %504 = vmatmul.mubr.bf16.gmra.mrb[0].mxu0 %v410
      %v505 = vpop.f32.mrb[0].mxu0
      %v506 = vadd.f32 0.0, %v505
      %v507 = vpop.f32.mrb[0].mxu0
      %v508 = vadd.f32 0.0, %v507
      %v509 = vpop.f32.mrb[0].mxu0
      %v510 = vadd.f32 0.0, %v509
      %v511 = vpop.f32.mrb[0].mxu0
      %v512 = vadd.f32 0.0, %v511
      %513 = vmatprep.mubr.bf16.mxu0 0
      %514 = vmatmul.mubr.bf16.gmra.mrb[0].mxu0 %v413
      %v515 = vpop.f32.mrb[0].mxu0
      %v516 = vadd.f32 0.0, %v515
      %v517 = vpop.f32.mrb[0].mxu0
      %v518 = vadd.f32 0.0, %v517
      %v519 = vpop.f32.mrb[0].mxu0
      %v520 = vadd.f32 0.0, %v519
      %v521 = vpop.f32.mrb[0].mxu0
      %v522 = vadd.f32 0.0, %v521
      %523 = vmatprep.mubr.bf16.mxu0 0
      %524 = vmatmul.mubr.bf16.gmra.mrb[0].mxu0 %v416
      %v525 = vpop.f32.mrb[0].mxu0
      %v526 = vadd.f32 0.0, %v525
      %v527 = vpop.f32.mrb[0].mxu0
      %v528 = vadd.f32 0.0, %v527
      %v529 = vpop.f32.mrb[0].mxu0
      %v530 = vadd.f32 0.0, %v529
      %v531 = vpop.f32.mrb[0].mxu0
      %v532 = vadd.f32 0.0, %v531
      %533 = vmatprep.mubr.bf16.mxu0 0
      %534 = vmatmul.mubr.bf16.gmra.mrb[0].mxu0 %v419
      %v535 = vpop.f32.mrb[0].mxu0
      %v536 = vadd.f32 0.0, %v535
      %v537 = vpop.f32.mrb[0].mxu0
      %v538 = vadd.f32 0.0, %v537
      %v539 = vpop.f32.mrb[0].mxu0
      %v540 = vadd.f32 0.0, %v539
      %v541 = vpop.f32.mrb[0].mxu0
      %v542 = vadd.f32 0.0, %v541
      %543 = vmatprep.mubr.bf16.mxu0 0
      %544 = vmatmul.mubr.bf16.gmra.mrb[0].mxu0 %v422
      %v545 = vpop.f32.mrb[0].mxu0
      %v546 = vadd.f32 0.0, %v545
      %v547 = vpop.f32.mrb[0].mxu0
      %v548 = vadd.f32 0.0, %v547
      %v549 = vpop.f32.mrb[0].mxu0
      %v550 = vadd.f32 0.0, %v549
      %v551 = vpop.f32.mrb[0].mxu0
      %v552 = vadd.f32 0.0, %v551
      %553 = vmatprep.mubr.bf16.mxu0 0
      %554 = vmatmul.mubr.bf16.gmra.mrb[0].mxu0 %v425
      %v555 = vpop.f32.mrb[0].mxu0
      %v556 = vadd.f32 0.0, %v555
      %v557 = vpop.f32.mrb[0].mxu0
      %v558 = vadd.f32 0.0, %v557
      %v559 = vpop.f32.mrb[0].mxu0
      %v560 = vadd.f32 0.0, %v559
      %v561 = vpop.f32.mrb[0].mxu0
      %v562 = vadd.f32 0.0, %v561
      %563 = vmatprep.mubr.bf16.mxu0 0
      %564 = vmatmul.mubr.bf16.gmra.mrb[0].mxu0 %v428
      %v565 = vpop.f32.mrb[0].mxu0
      %v566 = vadd.f32 0.0, %v565
      %v567 = vpop.f32.mrb[0].mxu0
      %v568 = vadd.f32 0.0, %v567
      %v569 = vpop.f32.mrb[0].mxu0
      %v570 = vadd.f32 0.0, %v569
      %v571 = vpop.f32.mrb[0].mxu0
      %v572 = vadd.f32 0.0, %v571
      %573 = vmatprep.mubr.bf16.mxu0 0
      %574 = vmatmul.mubr.bf16.gmra.mrb[0].mxu0 %v431
      %v575 = vpop.f32.mrb[0].mxu0
      %v576 = vadd.f32 0.0, %v575
      %v577 = vpop.f32.mrb[0].mxu0
      %v578 = vadd.f32 0.0, %v577
      %v579 = vpop.f32.mrb[0].mxu0
      %v580 = vadd.f32 0.0, %v579
      %v581 = vpop.f32.mrb[0].mxu0
      %v582 = vadd.f32 0.0, %v581
      %583 = vmatprep.mubr.bf16.mxu0 0
      %584 = vmatmul.mubr.bf16.gmra.mrb[0].mxu0 %v434
      %v585 = vpop.f32.mrb[0].mxu0
      %v586 = vadd.f32 0.0, %v585
      %v587 = vpop.f32.mrb[0].mxu0
      %v588 = vadd.f32 0.0, %v587
      %v589 = vpop.f32.mrb[0].mxu0
      %v590 = vadd.f32 0.0, %v589
      %v591 = vpop.f32.mrb[0].mxu0
      %v592 = vadd.f32 0.0, %v591
      %593 = vmatprep.mubr.bf16.mxu0 0
      %594 = vmatmul.mubr.bf16.gmra.mrb[0].mxu0 %v437
      %v595 = vpop.f32.mrb[0].mxu0
      %v596 = vadd.f32 0.0, %v595
      %v597 = vpop.f32.mrb[0].mxu0
      %v598 = vadd.f32 0.0, %v597
      %v599 = vpop.f32.mrb[0].mxu0
      %v600 = vadd.f32 0.0, %v599
      %v601 = vpop.f32.mrb[0].mxu0
      %v602 = vadd.f32 0.0, %v601
      %603 = vmatprep.mubr.bf16.mxu0 0
      %604 = vmatmul.mubr.bf16.gmra.mrb[0].mxu0 %v440
      %v605 = vpop.f32.mrb[0].mxu0
      %v606 = vadd.f32 0.0, %v605
      %v607 = vpop.f32.mrb[0].mxu0
      %v608 = vadd.f32 0.0, %v607
      %v609 = vpop.f32.mrb[0].mxu0
      %v610 = vadd.f32 0.0, %v609
      %v611 = vpop.f32.mrb[0].mxu0
      %v612 = vadd.f32 0.0, %v611
      %613 = vmatprep.mubr.bf16.mxu0 0
      %614 = vmatmul.mubr.bf16.gmra.mrb[0].mxu0 %v443
      %v615 = vpop.f32.mrb[0].mxu0
      %v616 = vadd.f32 0.0, %v615
      %v617 = vpop.f32.mrb[0].mxu0
      %v618 = vadd.f32 0.0, %v617
      %v619 = vpop.f32.mrb[0].mxu0
      %v620 = vadd.f32 0.0, %v619
      %v621 = vpop.f32.mrb[0].mxu0
      %v622 = vadd.f32 0.0, %v621
      %623 = vmatprep.mubr.bf16.mxu0 0
      %624 = vmatmul.mubr.bf16.gmra.mrb[0].mxu0 %v446
      %v625 = vpop.f32.mrb[0].mxu0
      %v626 = vadd.f32 0.0, %v625
      %v627 = vpop.f32.mrb[0].mxu0
      %v628 = vadd.f32 0.0, %v627
      %v629 = vpop.f32.mrb[0].mxu0
      %v630 = vadd.f32 0.0, %v629
      %v631 = vpop.f32.mrb[0].mxu0
      %v632 = vadd.f32 0.0, %v631
      %633 = vmatprep.mubr.bf16.mxu0 0
      %634 = vmatmul.mubr.bf16.gmra.mrb[0].mxu0 %v449
      %v635 = vpop.f32.mrb[0].mxu0
      %v636 = vadd.f32 0.0, %v635
      %v637 = vpop.f32.mrb[0].mxu0
      %v638 = vadd.f32 0.0, %v637
      %v639 = vpop.f32.mrb[0].mxu0
      %v640 = vadd.f32 0.0, %v639
      %v641 = vpop.f32.mrb[0].mxu0
      %v642 = vadd.f32 0.0, %v641
      %643 = vdwg.mxu0
      %v644 = vmax.f32 %v486, %v488
      %645 = vmax.xlane.f32.xlu0 %v644
      %v646 = vpop.xlane.xlu0 %645
      %v647 = vmax.f32 %v490, %v492
      %648 = vmax.xlane.f32.xlu0 %v647
      %v649 = vpop.xlane.xlu0 %648
      %v650 = vmax.f32 %v496, %v498
      %651 = vmax.xlane.f32.xlu0 %v650
      %v652 = vpop.xlane.xlu0 %651
      %v653 = vmax.f32 %v500, %v502
      %654 = vmax.xlane.f32.xlu0 %v653
      %v655 = vpop.xlane.xlu0 %654
      %v656 = vmax.f32 %v506, %v508
      %657 = vmax.xlane.f32.xlu0 %v656
      %v658 = vpop.xlane.xlu0 %657
      %v659 = vmax.f32 %v510, %v512
      %660 = vmax.xlane.f32.xlu0 %v659
      %v661 = vpop.xlane.xlu0 %660
      %v662 = vmax.f32 %v516, %v518
      %663 = vmax.xlane.f32.xlu0 %v662
      %v664 = vpop.xlane.xlu0 %663
      %v665 = vmax.f32 %v520, %v522
      %666 = vmax.xlane.f32.xlu0 %v665
      %v667 = vpop.xlane.xlu0 %666
      %v668 = vmax.f32 %v526, %v528
      %669 = vmax.xlane.f32.xlu0 %v668
      %v670 = vpop.xlane.xlu0 %669
      %v671 = vmax.f32 %v530, %v532
      %672 = vmax.xlane.f32.xlu0 %v671
      %v673 = vpop.xlane.xlu0 %672
      %v674 = vmax.f32 %v536, %v538
      %675 = vmax.xlane.f32.xlu0 %v674
      %v676 = vpop.xlane.xlu0 %675
      %v677 = vmax.f32 %v540, %v542
      %678 = vmax.xlane.f32.xlu0 %v677
      %v679 = vpop.xlane.xlu0 %678
      %v680 = vmax.f32 %v546, %v548
      %681 = vmax.xlane.f32.xlu0 %v680
      %v682 = vpop.xlane.xlu0 %681
      %v683 = vmax.f32 %v550, %v552
      %684 = vmax.xlane.f32.xlu0 %v683
      %v685 = vpop.xlane.xlu0 %684
      %v686 = vmax.f32 %v556, %v558
      %687 = vmax.xlane.f32.xlu0 %v686
      %v688 = vpop.xlane.xlu0 %687
      %v689 = vmax.f32 %v560, %v562
      %690 = vmax.xlane.f32.xlu0 %v689
      %v691 = vpop.xlane.xlu0 %690
      %v692 = vmax.f32 %v566, %v568
      %693 = vmax.xlane.f32.xlu0 %v692
      %v694 = vpop.xlane.xlu0 %693
      %v695 = vmax.f32 %v570, %v572
      %696 = vmax.xlane.f32.xlu0 %v695
      %v697 = vpop.xlane.xlu0 %696
      %v698 = vmax.f32 %v576, %v578
      %699 = vmax.xlane.f32.xlu0 %v698
      %v700 = vpop.xlane.xlu0 %699
      %v701 = vmax.f32 %v580, %v582
      %702 = vmax.xlane.f32.xlu0 %v701
      %v703 = vpop.xlane.xlu0 %702
      %v704 = vmax.f32 %v586, %v588
      %705 = vmax.xlane.f32.xlu0 %v704
      %v706 = vpop.xlane.xlu0 %705
      %v707 = vmax.f32 %v590, %v592
      %708 = vmax.xlane.f32.xlu0 %v707
      %v709 = vpop.xlane.xlu0 %708
      %v710 = vmax.f32 %v596, %v598
      %711 = vmax.xlane.f32.xlu0 %v710
      %v712 = vpop.xlane.xlu0 %711
      %v713 = vmax.f32 %v600, %v602
      %714 = vmax.xlane.f32.xlu0 %v713
      %v715 = vpop.xlane.xlu0 %714
      %v716 = vmax.f32 %v606, %v608
      %717 = vmax.xlane.f32.xlu0 %v716
      %v718 = vpop.xlane.xlu0 %717
      %v719 = vmax.f32 %v610, %v612
      %720 = vmax.xlane.f32.xlu0 %v719
      %v721 = vpop.xlane.xlu0 %720
      %v722 = vmax.f32 %v616, %v618
      %723 = vmax.xlane.f32.xlu0 %v722
      %v724 = vpop.xlane.xlu0 %723
      %v725 = vmax.f32 %v620, %v622
      %726 = vmax.xlane.f32.xlu0 %v725
      %v727 = vpop.xlane.xlu0 %726
      %v728 = vmax.f32 %v626, %v628
      %729 = vmax.xlane.f32.xlu0 %v728
      %v730 = vpop.xlane.xlu0 %729
      %v731 = vmax.f32 %v630, %v632
      %732 = vmax.xlane.f32.xlu0 %v731
      %v733 = vpop.xlane.xlu0 %732
      %v734 = vmax.f32 %v636, %v638
      %735 = vmax.xlane.f32.xlu0 %v734
      %v736 = vpop.xlane.xlu0 %735
      %v737 = vmax.f32 %v640, %v642
      %738 = vmax.xlane.f32.xlu0 %v737
      %v739 = vpop.xlane.xlu0 %738
      %v740 = vsub.f32 1.0, %v646
      %v741 = vsub.f32 1.0, %v649
      %v742 = vsub.f32 1.0, %v652
      %v743 = vsub.f32 1.0, %v655
      %v744 = vsub.f32 1.0, %v658
      %v745 = vsub.f32 1.0, %v661
      %v746 = vsub.f32 1.0, %v664
      %v747 = vsub.f32 1.0, %v667
      %v748 = vsub.f32 1.0, %v670
      %v749 = vsub.f32 1.0, %v673
      %v750 = vsub.f32 1.0, %v676
      %v751 = vsub.f32 1.0, %v679
      %v752 = vsub.f32 1.0, %v682
      %v753 = vsub.f32 1.0, %v685
      %v754 = vsub.f32 1.0, %v688
      %v755 = vsub.f32 1.0, %v691
      %v756 = vsub.f32 1.0, %v694
      %v757 = vsub.f32 1.0, %v697
      %v758 = vsub.f32 1.0, %v700
      %v759 = vsub.f32 1.0, %v703
      %v760 = vsub.f32 1.0, %v706
      %v761 = vsub.f32 1.0, %v709
      %v762 = vsub.f32 1.0, %v712
      %v763 = vsub.f32 1.0, %v715
      %v764 = vsub.f32 1.0, %v718
      %v765 = vsub.f32 1.0, %v721
      %v766 = vsub.f32 1.0, %v724
      %v767 = vsub.f32 1.0, %v727
      %v768 = vsub.f32 1.0, %v730
      %v769 = vsub.f32 1.0, %v733
      %v770 = vsub.f32 1.0, %v736
      %v771 = vsub.f32 1.0, %v739
      %v772 = vmax.f32 %v740, 0.0
      %v773 = vmax.f32 %v741, 0.0
      %v774 = vmax.f32 %v742, 0.0
      %v775 = vmax.f32 %v743, 0.0
      %v776 = vmax.f32 %v744, 0.0
      %v777 = vmax.f32 %v745, 0.0
      %v778 = vmax.f32 %v746, 0.0
      %v779 = vmax.f32 %v747, 0.0
      %v780 = vmax.f32 %v748, 0.0
      %v781 = vmax.f32 %v749, 0.0
      %v782 = vmax.f32 %v750, 0.0
      %v783 = vmax.f32 %v751, 0.0
      %v784 = vmax.f32 %v752, 0.0
      %v785 = vmax.f32 %v753, 0.0
      %v786 = vmax.f32 %v754, 0.0
      %v787 = vmax.f32 %v755, 0.0
      %v788 = vmax.f32 %v756, 0.0
      %v789 = vmax.f32 %v757, 0.0
      %v790 = vmax.f32 %v758, 0.0
      %v791 = vmax.f32 %v759, 0.0
      %v792 = vmax.f32 %v760, 0.0
      %v793 = vmax.f32 %v761, 0.0
      %v794 = vmax.f32 %v762, 0.0
      %v795 = vmax.f32 %v763, 0.0
      %v796 = vmax.f32 %v764, 0.0
      %v797 = vmax.f32 %v765, 0.0
      %v798 = vmax.f32 %v766, 0.0
      %v799 = vmax.f32 %v767, 0.0
      %v800 = vmax.f32 %v768, 0.0
      %v801 = vmax.f32 %v769, 0.0
      %v802 = vmax.f32 %v770, 0.0
      %v803 = vmax.f32 %v771, 0.0
      %v804 = vadd.f32 %v772, 1e-05
      %v805 = vadd.f32 %v773, 1e-05
      %v806 = vadd.f32 %v774, 1e-05
      %v807 = vadd.f32 %v775, 1e-05
      %v808 = vadd.f32 %v776, 1e-05
      %v809 = vadd.f32 %v777, 1e-05
      %v810 = vadd.f32 %v778, 1e-05
      %v811 = vadd.f32 %v779, 1e-05
      %v812 = vadd.f32 %v780, 1e-05
      %v813 = vadd.f32 %v781, 1e-05
      %v814 = vadd.f32 %v782, 1e-05
      %v815 = vadd.f32 %v783, 1e-05
      %v816 = vadd.f32 %v784, 1e-05
      %v817 = vadd.f32 %v785, 1e-05
      %v818 = vadd.f32 %v786, 1e-05
      %v819 = vadd.f32 %v787, 1e-05
      %v820 = vadd.f32 %v788, 1e-05
      %v821 = vadd.f32 %v789, 1e-05
      %v822 = vadd.f32 %v790, 1e-05
      %v823 = vadd.f32 %v791, 1e-05
      %v824 = vadd.f32 %v792, 1e-05
      %v825 = vadd.f32 %v793, 1e-05
      %v826 = vadd.f32 %v794, 1e-05
      %v827 = vadd.f32 %v795, 1e-05
      %v828 = vadd.f32 %v796, 1e-05
      %v829 = vadd.f32 %v797, 1e-05
      %v830 = vadd.f32 %v798, 1e-05
      %v831 = vadd.f32 %v799, 1e-05
      %v832 = vadd.f32 %v800, 1e-05
      %v833 = vadd.f32 %v801, 1e-05
      %v834 = vadd.f32 %v802, 1e-05
      %v835 = vadd.f32 %v803, 1e-05
      %v836 = vmul.f32 %v804, 0.5
      %v837 = vmul.f32 %v805, 0.5
      %v838 = vmul.f32 %v806, 0.5
      %v839 = vmul.f32 %v807, 0.5
      %v840 = vmul.f32 %v808, 0.5
      %v841 = vmul.f32 %v809, 0.5
      %v842 = vmul.f32 %v810, 0.5
      %v843 = vmul.f32 %v811, 0.5
      %v844 = vmul.f32 %v812, 0.5
      %v845 = vmul.f32 %v813, 0.5
      %v846 = vmul.f32 %v814, 0.5
      %v847 = vmul.f32 %v815, 0.5
      %v848 = vmul.f32 %v816, 0.5
      %v849 = vmul.f32 %v817, 0.5
      %v850 = vmul.f32 %v818, 0.5
      %v851 = vmul.f32 %v819, 0.5
      %v852 = vmul.f32 %v820, 0.5
      %v853 = vmul.f32 %v821, 0.5
      %v854 = vmul.f32 %v822, 0.5
      %v855 = vmul.f32 %v823, 0.5
      %v856 = vmul.f32 %v824, 0.5
      %v857 = vmul.f32 %v825, 0.5
      %v858 = vmul.f32 %v826, 0.5
      %v859 = vmul.f32 %v827, 0.5
      %v860 = vmul.f32 %v828, 0.5
      %v861 = vmul.f32 %v829, 0.5
      %v862 = vmul.f32 %v830, 0.5
      %v863 = vmul.f32 %v831, 0.5
      %v864 = vmul.f32 %v832, 0.5
      %v865 = vmul.f32 %v833, 0.5
      %v866 = vmul.f32 %v834, 0.5
      %v867 = vmul.f32 %v835, 0.5
      %v868 = vrcp.pop %v836
      %v869 = vrcp.pop %v837
      %v870 = vrcp.pop %v838
      %v871 = vrcp.pop %v839
      %v872 = vrcp.pop %v840
      %v873 = vrcp.pop %v841
      %v874 = vrcp.pop %v842
      %v875 = vrcp.pop %v843
      %v876 = vrcp.pop %v844
      %v877 = vrcp.pop %v845
      %v878 = vrcp.pop %v846
      %v879 = vrcp.pop %v847
      %v880 = vrcp.pop %v848
      %v881 = vrcp.pop %v849
      %v882 = vrcp.pop %v850
      %v883 = vrcp.pop %v851
      %v884 = vrcp.pop %v852
      %v885 = vrcp.pop %v853
      %v886 = vrcp.pop %v854
      %v887 = vrcp.pop %v855
      %v888 = vrcp.pop %v856
      %v889 = vrcp.pop %v857
      %v890 = vrcp.pop %v858
      %v891 = vrcp.pop %v859
      %v892 = vrcp.pop %v860
      %v893 = vrcp.pop %v861
      %v894 = vrcp.pop %v862
      %v895 = vrcp.pop %v863
      %v896 = vrcp.pop %v864
      %v897 = vrcp.pop %v865
      %v898 = vrcp.pop %v866
      %v899 = vrcp.pop %v867
      %v900 = vsub.f32 %v486, %v646
      %v901 = vsub.f32 %v488, %v646
      %v902 = vsub.f32 %v490, %v649
      %v903 = vsub.f32 %v492, %v649
      %v904 = vsub.f32 %v496, %v652
      %v905 = vsub.f32 %v498, %v652
      %v906 = vsub.f32 %v500, %v655
      %v907 = vsub.f32 %v502, %v655
      %v908 = vsub.f32 %v506, %v658
      %v909 = vsub.f32 %v508, %v658
      %v910 = vsub.f32 %v510, %v661
      %v911 = vsub.f32 %v512, %v661
      %v912 = vsub.f32 %v516, %v664
      %v913 = vsub.f32 %v518, %v664
      %v914 = vsub.f32 %v520, %v667
      %v915 = vsub.f32 %v522, %v667
      %v916 = vsub.f32 %v526, %v670
      %v917 = vsub.f32 %v528, %v670
      %v918 = vsub.f32 %v530, %v673
      %v919 = vsub.f32 %v532, %v673
      %v920 = vsub.f32 %v536, %v676
      %v921 = vsub.f32 %v538, %v676
      %v922 = vsub.f32 %v540, %v679
      %v923 = vsub.f32 %v542, %v679
      %v924 = vsub.f32 %v546, %v682
      %v925 = vsub.f32 %v548, %v682
      %v926 = vsub.f32 %v550, %v685
      %v927 = vsub.f32 %v552, %v685
      %v928 = vsub.f32 %v556, %v688
      %v929 = vsub.f32 %v558, %v688
      %v930 = vsub.f32 %v560, %v691
      %v931 = vsub.f32 %v562, %v691
      %v932 = vsub.f32 %v566, %v694
      %v933 = vsub.f32 %v568, %v694
      %v934 = vsub.f32 %v570, %v697
      %v935 = vsub.f32 %v572, %v697
      %v936 = vsub.f32 %v576, %v700
      %v937 = vsub.f32 %v578, %v700
      %v938 = vsub.f32 %v580, %v703
      %v939 = vsub.f32 %v582, %v703
      %v940 = vsub.f32 %v586, %v706
      %v941 = vsub.f32 %v588, %v706
      %v942 = vsub.f32 %v590, %v709
      %v943 = vsub.f32 %v592, %v709
      %v944 = vsub.f32 %v596, %v712
      %v945 = vsub.f32 %v598, %v712
      %v946 = vsub.f32 %v600, %v715
      %v947 = vsub.f32 %v602, %v715
      %v948 = vsub.f32 %v606, %v718
      %v949 = vsub.f32 %v608, %v718
      %v950 = vsub.f32 %v610, %v721
      %v951 = vsub.f32 %v612, %v721
      %v952 = vsub.f32 %v616, %v724
      %v953 = vsub.f32 %v618, %v724
      %v954 = vsub.f32 %v620, %v727
      %v955 = vsub.f32 %v622, %v727
      %v956 = vsub.f32 %v626, %v730
      %v957 = vsub.f32 %v628, %v730
      %v958 = vsub.f32 %v630, %v733
      %v959 = vsub.f32 %v632, %v733
      %v960 = vsub.f32 %v636, %v736
      %v961 = vsub.f32 %v638, %v736
      %v962 = vsub.f32 %v640, %v739
      %v963 = vsub.f32 %v642, %v739
      %v964 = vmul.f32 %v900, %v868
      %v965 = vmul.f32 %v901, %v868
      %v966 = vmul.f32 %v902, %v869
      %v967 = vmul.f32 %v903, %v869
      %v968 = vmul.f32 %v904, %v870
      %v969 = vmul.f32 %v905, %v870
      %v970 = vmul.f32 %v906, %v871
      %v971 = vmul.f32 %v907, %v871
      %v972 = vmul.f32 %v908, %v872
      %v973 = vmul.f32 %v909, %v872
      %v974 = vmul.f32 %v910, %v873
      %v975 = vmul.f32 %v911, %v873
      %v976 = vmul.f32 %v912, %v874
      %v977 = vmul.f32 %v913, %v874
      %v978 = vmul.f32 %v914, %v875
      %v979 = vmul.f32 %v915, %v875
      %v980 = vmul.f32 %v916, %v876
      %v981 = vmul.f32 %v917, %v876
      %v982 = vmul.f32 %v918, %v877
      %v983 = vmul.f32 %v919, %v877
      %v984 = vmul.f32 %v920, %v878
      %v985 = vmul.f32 %v921, %v878
      %v986 = vmul.f32 %v922, %v879
      %v987 = vmul.f32 %v923, %v879
      %v988 = vmul.f32 %v924, %v880
      %v989 = vmul.f32 %v925, %v880
      %v990 = vmul.f32 %v926, %v881
      %v991 = vmul.f32 %v927, %v881
      %v992 = vmul.f32 %v928, %v882
      %v993 = vmul.f32 %v929, %v882
      %v994 = vmul.f32 %v930, %v883
      %v995 = vmul.f32 %v931, %v883
      %v996 = vmul.f32 %v932, %v884
      %v997 = vmul.f32 %v933, %v884
      %v998 = vmul.f32 %v934, %v885
      %v999 = vmul.f32 %v935, %v885
      %v1000 = vmul.f32 %v936, %v886
      %v1001 = vmul.f32 %v937, %v886
      %v1002 = vmul.f32 %v938, %v887
      %v1003 = vmul.f32 %v939, %v887
      %v1004 = vmul.f32 %v940, %v888
      %v1005 = vmul.f32 %v941, %v888
      %v1006 = vmul.f32 %v942, %v889
      %v1007 = vmul.f32 %v943, %v889
      %v1008 = vmul.f32 %v944, %v890
      %v1009 = vmul.f32 %v945, %v890
      %v1010 = vmul.f32 %v946, %v891
      %v1011 = vmul.f32 %v947, %v891
      %v1012 = vmul.f32 %v948, %v892
      %v1013 = vmul.f32 %v949, %v892
      %v1014 = vmul.f32 %v950, %v893
      %v1015 = vmul.f32 %v951, %v893
      %v1016 = vmul.f32 %v952, %v894
      %v1017 = vmul.f32 %v953, %v894
      %v1018 = vmul.f32 %v954, %v895
      %v1019 = vmul.f32 %v955, %v895
      %v1020 = vmul.f32 %v956, %v896
      %v1021 = vmul.f32 %v957, %v896
      %v1022 = vmul.f32 %v958, %v897
      %v1023 = vmul.f32 %v959, %v897
      %v1024 = vmul.f32 %v960, %v898
      %v1025 = vmul.f32 %v961, %v898
      %v1026 = vmul.f32 %v962, %v899
      %v1027 = vmul.f32 %v963, %v899
      %v1028 = vpack.c.bf16 %v966, %v964
      %v1029 = vpack.c.bf16 %v967, %v965
      %v1030 = vpack.c.bf16 %v970, %v968
      %v1031 = vpack.c.bf16 %v971, %v969
      %v1032 = vpack.c.bf16 %v974, %v972
      %v1033 = vpack.c.bf16 %v975, %v973
      %v1034 = vpack.c.bf16 %v978, %v976
      %v1035 = vpack.c.bf16 %v979, %v977
      %v1036 = vpack.c.bf16 %v982, %v980
      %v1037 = vpack.c.bf16 %v983, %v981
      %v1038 = vpack.c.bf16 %v986, %v984
      %v1039 = vpack.c.bf16 %v987, %v985
      %v1040 = vpack.c.bf16 %v990, %v988
      %v1041 = vpack.c.bf16 %v991, %v989
      %v1042 = vpack.c.bf16 %v994, %v992
      %v1043 = vpack.c.bf16 %v995, %v993
      %v1044 = vpack.c.bf16 %v998, %v996
      %v1045 = vpack.c.bf16 %v999, %v997
      %v1046 = vpack.c.bf16 %v1002, %v1000
      %v1047 = vpack.c.bf16 %v1003, %v1001
      %v1048 = vpack.c.bf16 %v1006, %v1004
      %v1049 = vpack.c.bf16 %v1007, %v1005
      %v1050 = vpack.c.bf16 %v1010, %v1008
      %v1051 = vpack.c.bf16 %v1011, %v1009
      %v1052 = vpack.c.bf16 %v1014, %v1012
      %v1053 = vpack.c.bf16 %v1015, %v1013
      %v1054 = vpack.c.bf16 %v1018, %v1016
      %v1055 = vpack.c.bf16 %v1019, %v1017
      %v1056 = vpack.c.bf16 %v1022, %v1020
      %v1057 = vpack.c.bf16 %v1023, %v1021
      %v1058 = vpack.c.bf16 %v1026, %v1024
      %v1059 = vpack.c.bf16 %v1027, %v1025
      %v1061 = vmul.bf16 %v1028, 1069105081
      %v1062 = vpow.bf16.pop %v1061
      %v1064 = vmul.bf16 %v1029, 1069105081
      %v1065 = vpow.bf16.pop %v1064
      %v1067 = vmul.bf16 %v1030, 1069105081
      %v1068 = vpow.bf16.pop %v1067
      %v1070 = vmul.bf16 %v1031, 1069105081
      %v1071 = vpow.bf16.pop %v1070
      %v1073 = vmul.bf16 %v1032, 1069105081
      %v1074 = vpow.bf16.pop %v1073
      %v1076 = vmul.bf16 %v1033, 1069105081
      %v1077 = vpow.bf16.pop %v1076
      %v1079 = vmul.bf16 %v1034, 1069105081
      %v1080 = vpow.bf16.pop %v1079
      %v1082 = vmul.bf16 %v1035, 1069105081
      %v1083 = vpow.bf16.pop %v1082
      %v1085 = vmul.bf16 %v1036, 1069105081
      %v1086 = vpow.bf16.pop %v1085
      %v1088 = vmul.bf16 %v1037, 1069105081
      %v1089 = vpow.bf16.pop %v1088
      %v1091 = vmul.bf16 %v1038, 1069105081
      %v1092 = vpow.bf16.pop %v1091
      %v1094 = vmul.bf16 %v1039, 1069105081
      %v1095 = vpow.bf16.pop %v1094
      %v1097 = vmul.bf16 %v1040, 1069105081
      %v1098 = vpow.bf16.pop %v1097
      %v1100 = vmul.bf16 %v1041, 1069105081
      %v1101 = vpow.bf16.pop %v1100
      %v1103 = vmul.bf16 %v1042, 1069105081
      %v1104 = vpow.bf16.pop %v1103
      %v1106 = vmul.bf16 %v1043, 1069105081
      %v1107 = vpow.bf16.pop %v1106
      %v1109 = vmul.bf16 %v1044, 1069105081
      %v1110 = vpow.bf16.pop %v1109
      %v1112 = vmul.bf16 %v1045, 1069105081
      %v1113 = vpow.bf16.pop %v1112
      %v1115 = vmul.bf16 %v1046, 1069105081
      %v1116 = vpow.bf16.pop %v1115
      %v1118 = vmul.bf16 %v1047, 1069105081
      %v1119 = vpow.bf16.pop %v1118
      %v1121 = vmul.bf16 %v1048, 1069105081
      %v1122 = vpow.bf16.pop %v1121
      %v1124 = vmul.bf16 %v1049, 1069105081
      %v1125 = vpow.bf16.pop %v1124
      %v1127 = vmul.bf16 %v1050, 1069105081
      %v1128 = vpow.bf16.pop %v1127
      %v1130 = vmul.bf16 %v1051, 1069105081
      %v1131 = vpow.bf16.pop %v1130
      %v1133 = vmul.bf16 %v1052, 1069105081
      %v1134 = vpow.bf16.pop %v1133
      %v1136 = vmul.bf16 %v1053, 1069105081
      %v1137 = vpow.bf16.pop %v1136
      %v1139 = vmul.bf16 %v1054, 1069105081
      %v1140 = vpow.bf16.pop %v1139
      %v1142 = vmul.bf16 %v1055, 1069105081
      %v1143 = vpow.bf16.pop %v1142
      %v1145 = vmul.bf16 %v1056, 1069105081
      %v1146 = vpow.bf16.pop %v1145
      %v1148 = vmul.bf16 %v1057, 1069105081
      %v1149 = vpow.bf16.pop %v1148
      %v1151 = vmul.bf16 %v1058, 1069105081
      %v1152 = vpow.bf16.pop %v1151
      %v1154 = vmul.bf16 %v1059, 1069105081
      %v1155 = vpow.bf16.pop %v1154
      %v1156 = vunpack.c.l.bf16 %v1062
      %v1157 = vunpack.c.l.bf16 %v1065
      %v1158 = vunpack.c.h.bf16 %v1062
      %v1159 = vunpack.c.h.bf16 %v1065
      %v1160 = vunpack.c.l.bf16 %v1068
      %v1161 = vunpack.c.l.bf16 %v1071
      %v1162 = vunpack.c.h.bf16 %v1068
      %v1163 = vunpack.c.h.bf16 %v1071
      %v1164 = vunpack.c.l.bf16 %v1074
      %v1165 = vunpack.c.l.bf16 %v1077
      %v1166 = vunpack.c.h.bf16 %v1074
      %v1167 = vunpack.c.h.bf16 %v1077
      %v1168 = vunpack.c.l.bf16 %v1080
      %v1169 = vunpack.c.l.bf16 %v1083
      %v1170 = vunpack.c.h.bf16 %v1080
      %v1171 = vunpack.c.h.bf16 %v1083
      %v1172 = vunpack.c.l.bf16 %v1086
      %v1173 = vunpack.c.l.bf16 %v1089
      %v1174 = vunpack.c.h.bf16 %v1086
      %v1175 = vunpack.c.h.bf16 %v1089
      %v1176 = vunpack.c.l.bf16 %v1092
      %v1177 = vunpack.c.l.bf16 %v1095
      %v1178 = vunpack.c.h.bf16 %v1092
      %v1179 = vunpack.c.h.bf16 %v1095
      %v1180 = vunpack.c.l.bf16 %v1098
      %v1181 = vunpack.c.l.bf16 %v1101
      %v1182 = vunpack.c.h.bf16 %v1098
      %v1183 = vunpack.c.h.bf16 %v1101
      %v1184 = vunpack.c.l.bf16 %v1104
      %v1185 = vunpack.c.l.bf16 %v1107
      %v1186 = vunpack.c.h.bf16 %v1104
      %v1187 = vunpack.c.h.bf16 %v1107
      %v1188 = vunpack.c.l.bf16 %v1110
      %v1189 = vunpack.c.l.bf16 %v1113
      %v1190 = vunpack.c.h.bf16 %v1110
      %v1191 = vunpack.c.h.bf16 %v1113
      %v1192 = vunpack.c.l.bf16 %v1116
      %v1193 = vunpack.c.l.bf16 %v1119
      %v1194 = vunpack.c.h.bf16 %v1116
      %v1195 = vunpack.c.h.bf16 %v1119
      %v1196 = vunpack.c.l.bf16 %v1122
      %v1197 = vunpack.c.l.bf16 %v1125
      %v1198 = vunpack.c.h.bf16 %v1122
      %v1199 = vunpack.c.h.bf16 %v1125
      %v1200 = vunpack.c.l.bf16 %v1128
      %v1201 = vunpack.c.l.bf16 %v1131
      %v1202 = vunpack.c.h.bf16 %v1128
      %v1203 = vunpack.c.h.bf16 %v1131
      %v1204 = vunpack.c.l.bf16 %v1134
      %v1205 = vunpack.c.l.bf16 %v1137
      %v1206 = vunpack.c.h.bf16 %v1134
      %v1207 = vunpack.c.h.bf16 %v1137
      %v1208 = vunpack.c.l.bf16 %v1140
      %v1209 = vunpack.c.l.bf16 %v1143
      %v1210 = vunpack.c.h.bf16 %v1140
      %v1211 = vunpack.c.h.bf16 %v1143
      %v1212 = vunpack.c.l.bf16 %v1146
      %v1213 = vunpack.c.l.bf16 %v1149
      %v1214 = vunpack.c.h.bf16 %v1146
      %v1215 = vunpack.c.h.bf16 %v1149
      %v1216 = vunpack.c.l.bf16 %v1152
      %v1217 = vunpack.c.l.bf16 %v1155
      %v1218 = vunpack.c.h.bf16 %v1152
      %v1219 = vunpack.c.h.bf16 %v1155
      %v1220 = vadd.f32 %v1156, %v1157
      %1221 = vadd.xlane.f32.xlu0 %v1220
      %v1222 = vpop.xlane.xlu0 %1221
      %v1223 = vadd.f32 %v1158, %v1159
      %1224 = vadd.xlane.f32.xlu0 %v1223
      %v1225 = vpop.xlane.xlu0 %1224
      %v1226 = vadd.f32 %v1160, %v1161
      %1227 = vadd.xlane.f32.xlu0 %v1226
      %v1228 = vpop.xlane.xlu0 %1227
      %v1229 = vadd.f32 %v1162, %v1163
      %1230 = vadd.xlane.f32.xlu0 %v1229
      %v1231 = vpop.xlane.xlu0 %1230
      %v1232 = vadd.f32 %v1164, %v1165
      %1233 = vadd.xlane.f32.xlu0 %v1232
      %v1234 = vpop.xlane.xlu0 %1233
      %v1235 = vadd.f32 %v1166, %v1167
      %1236 = vadd.xlane.f32.xlu0 %v1235
      %v1237 = vpop.xlane.xlu0 %1236
      %v1238 = vadd.f32 %v1168, %v1169
      %1239 = vadd.xlane.f32.xlu0 %v1238
      %v1240 = vpop.xlane.xlu0 %1239
      %v1241 = vadd.f32 %v1170, %v1171
      %1242 = vadd.xlane.f32.xlu0 %v1241
      %v1243 = vpop.xlane.xlu0 %1242
      %v1244 = vadd.f32 %v1172, %v1173
      %1245 = vadd.xlane.f32.xlu0 %v1244
      %v1246 = vpop.xlane.xlu0 %1245
      %v1247 = vadd.f32 %v1174, %v1175
      %1248 = vadd.xlane.f32.xlu0 %v1247
      %v1249 = vpop.xlane.xlu0 %1248
      %v1250 = vadd.f32 %v1176, %v1177
      %1251 = vadd.xlane.f32.xlu0 %v1250
      %v1252 = vpop.xlane.xlu0 %1251
      %v1253 = vadd.f32 %v1178, %v1179
      %1254 = vadd.xlane.f32.xlu0 %v1253
      %v1255 = vpop.xlane.xlu0 %1254
      %v1256 = vadd.f32 %v1180, %v1181
      %1257 = vadd.xlane.f32.xlu0 %v1256
      %v1258 = vpop.xlane.xlu0 %1257
      %v1259 = vadd.f32 %v1182, %v1183
      %1260 = vadd.xlane.f32.xlu0 %v1259
      %v1261 = vpop.xlane.xlu0 %1260
      %v1262 = vadd.f32 %v1184, %v1185
      %1263 = vadd.xlane.f32.xlu0 %v1262
      %v1264 = vpop.xlane.xlu0 %1263
      %v1265 = vadd.f32 %v1186, %v1187
      %1266 = vadd.xlane.f32.xlu0 %v1265
      %v1267 = vpop.xlane.xlu0 %1266
      %v1268 = vadd.f32 %v1188, %v1189
      %1269 = vadd.xlane.f32.xlu0 %v1268
      %v1270 = vpop.xlane.xlu0 %1269
      %v1271 = vadd.f32 %v1190, %v1191
      %1272 = vadd.xlane.f32.xlu0 %v1271
      %v1273 = vpop.xlane.xlu0 %1272
      %v1274 = vadd.f32 %v1192, %v1193
      %1275 = vadd.xlane.f32.xlu0 %v1274
      %v1276 = vpop.xlane.xlu0 %1275
      %v1277 = vadd.f32 %v1194, %v1195
      %1278 = vadd.xlane.f32.xlu0 %v1277
      %v1279 = vpop.xlane.xlu0 %1278
      %v1280 = vadd.f32 %v1196, %v1197
      %1281 = vadd.xlane.f32.xlu0 %v1280
      %v1282 = vpop.xlane.xlu0 %1281
      %v1283 = vadd.f32 %v1198, %v1199
      %1284 = vadd.xlane.f32.xlu0 %v1283
      %v1285 = vpop.xlane.xlu0 %1284
      %v1286 = vadd.f32 %v1200, %v1201
      %1287 = vadd.xlane.f32.xlu0 %v1286
      %v1288 = vpop.xlane.xlu0 %1287
      %v1289 = vadd.f32 %v1202, %v1203
      %1290 = vadd.xlane.f32.xlu0 %v1289
      %v1291 = vpop.xlane.xlu0 %1290
      %v1292 = vadd.f32 %v1204, %v1205
      %1293 = vadd.xlane.f32.xlu0 %v1292
      %v1294 = vpop.xlane.xlu0 %1293
      %v1295 = vadd.f32 %v1206, %v1207
      %1296 = vadd.xlane.f32.xlu0 %v1295
      %v1297 = vpop.xlane.xlu0 %1296
      %v1298 = vadd.f32 %v1208, %v1209
      %1299 = vadd.xlane.f32.xlu0 %v1298
      %v1300 = vpop.xlane.xlu0 %1299
      %v1301 = vadd.f32 %v1210, %v1211
      %1302 = vadd.xlane.f32.xlu0 %v1301
      %v1303 = vpop.xlane.xlu0 %1302
      %v1304 = vadd.f32 %v1212, %v1213
      %1305 = vadd.xlane.f32.xlu0 %v1304
      %v1306 = vpop.xlane.xlu0 %1305
      %v1307 = vadd.f32 %v1214, %v1215
      %1308 = vadd.xlane.f32.xlu0 %v1307
      %v1309 = vpop.xlane.xlu0 %1308
      %v1310 = vadd.f32 %v1216, %v1217
      %1311 = vadd.xlane.f32.xlu0 %v1310
      %v1312 = vpop.xlane.xlu0 %1311
      %v1313 = vadd.f32 %v1218, %v1219
      %1314 = vadd.xlane.f32.xlu0 %v1313
      %v1315 = vpop.xlane.xlu0 %1314
      %v1316 = vrcp.pop %v1222
      %v1317 = vmul.f32 1.0, %v1316
      %v1318 = vrcp.pop %v1225
      %v1319 = vmul.f32 1.0, %v1318
      %v1320 = vrcp.pop %v1228
      %v1321 = vmul.f32 1.0, %v1320
      %v1322 = vrcp.pop %v1231
      %v1323 = vmul.f32 1.0, %v1322
      %v1324 = vrcp.pop %v1234
      %v1325 = vmul.f32 1.0, %v1324
      %v1326 = vrcp.pop %v1237
      %v1327 = vmul.f32 1.0, %v1326
      %v1328 = vrcp.pop %v1240
      %v1329 = vmul.f32 1.0, %v1328
      %v1330 = vrcp.pop %v1243
      %v1331 = vmul.f32 1.0, %v1330
      %v1332 = vrcp.pop %v1246
      %v1333 = vmul.f32 1.0, %v1332
      %v1334 = vrcp.pop %v1249
      %v1335 = vmul.f32 1.0, %v1334
      %v1336 = vrcp.pop %v1252
      %v1337 = vmul.f32 1.0, %v1336
      %v1338 = vrcp.pop %v1255
      %v1339 = vmul.f32 1.0, %v1338
      %v1340 = vrcp.pop %v1258
      %v1341 = vmul.f32 1.0, %v1340
      %v1342 = vrcp.pop %v1261
      %v1343 = vmul.f32 1.0, %v1342
      %v1344 = vrcp.pop %v1264
      %v1345 = vmul.f32 1.0, %v1344
      %v1346 = vrcp.pop %v1267
      %v1347 = vmul.f32 1.0, %v1346
      %v1348 = vrcp.pop %v1270
      %v1349 = vmul.f32 1.0, %v1348
      %v1350 = vrcp.pop %v1273
      %v1351 = vmul.f32 1.0, %v1350
      %v1352 = vrcp.pop %v1276
      %v1353 = vmul.f32 1.0, %v1352
      %v1354 = vrcp.pop %v1279
      %v1355 = vmul.f32 1.0, %v1354
      %v1356 = vrcp.pop %v1282
      %v1357 = vmul.f32 1.0, %v1356
      %v1358 = vrcp.pop %v1285
      %v1359 = vmul.f32 1.0, %v1358
      %v1360 = vrcp.pop %v1288
      %v1361 = vmul.f32 1.0, %v1360
      %v1362 = vrcp.pop %v1291
      %v1363 = vmul.f32 1.0, %v1362
      %v1364 = vrcp.pop %v1294
      %v1365 = vmul.f32 1.0, %v1364
      %v1366 = vrcp.pop %v1297
      %v1367 = vmul.f32 1.0, %v1366
      %v1368 = vrcp.pop %v1300
      %v1369 = vmul.f32 1.0, %v1368
      %v1370 = vrcp.pop %v1303
      %v1371 = vmul.f32 1.0, %v1370
      %v1372 = vrcp.pop %v1306
      %v1373 = vmul.f32 1.0, %v1372
      %v1374 = vrcp.pop %v1309
      %v1375 = vmul.f32 1.0, %v1374
      %v1376 = vrcp.pop %v1312
      %v1377 = vmul.f32 1.0, %v1376
      %v1378 = vrcp.pop %v1315
      %v1379 = vmul.f32 1.0, %v1378
      %v1380 = vld [vmem:[#allocation2] sm:$0x3]
      %v1381 = vmul.f32 %v1156, %v1317
      %v1382 = vmul.f32 %v1157, %v1317
      %v1383 = vmul.f32 %v1158, %v1319
      %v1384 = vmul.f32 %v1159, %v1319
      %v1385 = vmul.f32 %v1160, %v1321
      %v1386 = vmul.f32 %v1161, %v1321
      %v1387 = vmul.f32 %v1162, %v1323
      %v1388 = vmul.f32 %v1163, %v1323
      %v1389 = vmul.f32 %v1164, %v1325
      %v1390 = vmul.f32 %v1165, %v1325
      %v1391 = vmul.f32 %v1166, %v1327
      %v1392 = vmul.f32 %v1167, %v1327
      %v1393 = vmul.f32 %v1168, %v1329
      %v1394 = vmul.f32 %v1169, %v1329
      %v1395 = vmul.f32 %v1170, %v1331
      %v1396 = vmul.f32 %v1171, %v1331
      %v1397 = vmul.f32 %v1172, %v1333
      %v1398 = vmul.f32 %v1173, %v1333
      %v1399 = vmul.f32 %v1174, %v1335
      %v1400 = vmul.f32 %v1175, %v1335
      %v1401 = vmul.f32 %v1176, %v1337
      %v1402 = vmul.f32 %v1177, %v1337
      %v1403 = vmul.f32 %v1178, %v1339
      %v1404 = vmul.f32 %v1179, %v1339
      %v1405 = vmul.f32 %v1180, %v1341
      %v1406 = vmul.f32 %v1181, %v1341
      %v1407 = vmul.f32 %v1182, %v1343
      %v1408 = vmul.f32 %v1183, %v1343
      %v1409 = vmul.f32 %v1184, %v1345
      %v1410 = vmul.f32 %v1185, %v1345
      %v1411 = vmul.f32 %v1186, %v1347
      %v1412 = vmul.f32 %v1187, %v1347
      %v1413 = vmul.f32 %v1188, %v1349
      %v1414 = vmul.f32 %v1189, %v1349
      %v1415 = vmul.f32 %v1190, %v1351
      %v1416 = vmul.f32 %v1191, %v1351
      %v1417 = vmul.f32 %v1192, %v1353
      %v1418 = vmul.f32 %v1193, %v1353
      %v1419 = vmul.f32 %v1194, %v1355
      %v1420 = vmul.f32 %v1195, %v1355
      %v1421 = vmul.f32 %v1196, %v1357
      %v1422 = vmul.f32 %v1197, %v1357
      %v1423 = vmul.f32 %v1198, %v1359
      %v1424 = vmul.f32 %v1199, %v1359
      %v1425 = vmul.f32 %v1200, %v1361
      %v1426 = vmul.f32 %v1201, %v1361
      %v1427 = vmul.f32 %v1202, %v1363
      %v1428 = vmul.f32 %v1203, %v1363
      %v1429 = vmul.f32 %v1204, %v1365
      %v1430 = vmul.f32 %v1205, %v1365
      %v1431 = vmul.f32 %v1206, %v1367
      %v1432 = vmul.f32 %v1207, %v1367
      %v1433 = vmul.f32 %v1208, %v1369
      %v1434 = vmul.f32 %v1209, %v1369
      %v1435 = vmul.f32 %v1210, %v1371
      %v1436 = vmul.f32 %v1211, %v1371
      %v1437 = vmul.f32 %v1212, %v1373
      %v1438 = vmul.f32 %v1213, %v1373
      %v1439 = vmul.f32 %v1214, %v1375
      %v1440 = vmul.f32 %v1215, %v1375
      %v1441 = vmul.f32 %v1216, %v1377
      %v1442 = vmul.f32 %v1217, %v1377
      %v1443 = vmul.f32 %v1218, %v1379
      %v1444 = vmul.f32 %v1219, %v1379
      %v1445 = vmax.f32 %v1381, %v1385
      %v1446 = vmax.f32 %v1383, %v1387
      %v1447 = vmax.f32 %v1445, %v1389
      %v1448 = vmax.f32 %v1446, %v1391
      %v1449 = vmax.f32 %v1447, %v1393
      %v1450 = vmax.f32 %v1448, %v1395
      %v1451 = vmax.f32 %v1449, %v1397
      %v1452 = vmax.f32 %v1450, %v1399
      %v1453 = vmax.f32 %v1451, %v1401
      %v1454 = vmax.f32 %v1452, %v1403
      %v1455 = vmax.f32 %v1453, %v1405
      %v1456 = vmax.f32 %v1454, %v1407
      %v1457 = vmax.f32 %v1455, %v1409
      %v1458 = vmax.f32 %v1456, %v1411
      %v1459 = vmax.f32 %v1457, %v1413
      %v1460 = vmax.f32 %v1458, %v1415
      %v1461 = vmax.f32 %v1459, %v1417
      %v1462 = vmax.f32 %v1460, %v1419
      %v1463 = vmax.f32 %v1461, %v1421
      %v1464 = vmax.f32 %v1462, %v1423
      %v1465 = vmax.f32 %v1463, %v1425
      %v1466 = vmax.f32 %v1464, %v1427
      %v1467 = vmax.f32 %v1465, %v1429
      %v1468 = vmax.f32 %v1466, %v1431
      %v1469 = vmax.f32 %v1467, %v1433
      %v1470 = vmax.f32 %v1468, %v1435
      %v1471 = vmax.f32 %v1469, %v1437
      %v1472 = vmax.f32 %v1470, %v1439
      %v1473 = vmax.f32 %v1471, %v1441
      %v1474 = vmax.f32 %v1472, %v1443
      %v1475 = vmax.f32 %v1473, %v1474
      %v1476 = vrot.slane %v1475, 4
      %v1477 = vmax.f32 %v1475, %v1476
      %v1478 = vrot.slane %v1477, 2
      %v1479 = vmax.f32 %v1477, %v1478
      %v1480 = vrot.slane %v1479, 1
      %v1481 = vmax.f32 %v1479, %v1480
      %v1482 = vmax.f32 %v1382, %v1386
      %v1483 = vmax.f32 %v1384, %v1388
      %v1484 = vmax.f32 %v1482, %v1390
      %v1485 = vmax.f32 %v1483, %v1392
      %v1486 = vmax.f32 %v1484, %v1394
      %v1487 = vmax.f32 %v1485, %v1396
      %v1488 = vmax.f32 %v1486, %v1398
      %v1489 = vmax.f32 %v1487, %v1400
      %v1490 = vmax.f32 %v1488, %v1402
      %v1491 = vmax.f32 %v1489, %v1404
      %v1492 = vmax.f32 %v1490, %v1406
      %v1493 = vmax.f32 %v1491, %v1408
      %v1494 = vmax.f32 %v1492, %v1410
      %v1495 = vmax.f32 %v1493, %v1412
      %v1496 = vmax.f32 %v1494, %v1414
      %v1497 = vmax.f32 %v1495, %v1416
      %v1498 = vmax.f32 %v1496, %v1418
      %v1499 = vmax.f32 %v1497, %v1420
      %v1500 = vmax.f32 %v1498, %v1422
      %v1501 = vmax.f32 %v1499, %v1424
      %v1502 = vmax.f32 %v1500, %v1426
      %v1503 = vmax.f32 %v1501, %v1428
      %v1504 = vmax.f32 %v1502, %v1430
      %v1505 = vmax.f32 %v1503, %v1432
      %v1506 = vmax.f32 %v1504, %v1434
      %v1507 = vmax.f32 %v1505, %v1436
      %v1508 = vmax.f32 %v1506, %v1438
      %v1509 = vmax.f32 %v1507, %v1440
      %v1510 = vmax.f32 %v1508, %v1442
      %v1511 = vmax.f32 %v1509, %v1444
      %v1512 = vmax.f32 %v1510, %v1511
      %v1513 = vrot.slane %v1512, 4
      %v1514 = vmax.f32 %v1512, %v1513
      %v1515 = vrot.slane %v1514, 2
      %v1516 = vmax.f32 %v1514, %v1515
      %v1517 = vrot.slane %v1516, 1
      %v1518 = vmax.f32 %v1516, %v1517
      %v1521 = vcombine.low %v1481, %v1518
      %v1523 = vunpack.c.l.s4 1966171168
      %v1524 = vunpack.c.0.s8 %v1523
      %v1525 = vlaneseq
      %v1526 = vshrl.u32 %v1525, 7
      %v1527 = vsub.s32 %v1524, %v1526
      %v1528 = vrot.slane %v1521, %v1527
      %v1530 = vunpack.c.l.s4 1966171168
      %v1531 = vunpack.c.0.s8 %v1530
      %v1532 = vlaneseq
      %v1533 = vshrl.u32 %v1532, 7
      %v1534 = vsub.s32 %v1531, %v1533
      %v1535 = vrot.slane %v1528, %v1534
      %v1537 = vmax.f32 %v1380, %v1535
      %v1538 = vlaneseq
      %vm1539 = vcmp.ge.s32.totalorder %v1538, 0
      %vm1540 = vcmp.lt.s32.totalorder %v1538, 256
      %vm1541 = vmand %vm1539, %vm1540
      %1542 = vst.msk [vmem:[#allocation2] sm:$0x3] %vm1541, %v1537
      // Predicated region
      $region37: #{tpu_custom_call.1} parent=31 // pred_check
        %p1543 = pneg %p233
      $region38: #{tpu_custom_call.1} parent=31 // pred_check_branch
        %1545 = sbr.rel (%p1543) target = $region40
      $region39: #{tpu_custom_call.1} parent=31 // pred_region
        %v1546 = vld [vmem:[#allocation2] sm:$0x3]
        %v1547 = vld [vmem:[%s228] sm:$0x3]
        %v1548 = vmul.f32 %v1546, %v1547
        %v1550 = vlaneseq
        %v1551 = vshrl.u32 %v1550, 7
        %v1552 = vsub.s32 0, %v1551
        %v1553 = vrot.slane %v1548, %v1552
        %v1554 = vlaneseq
        %v1555 = vshrl.u32 %v1554, 7
        %v1556 = vsub.s32 1, %v1555
        %v1557 = vrot.slane %v1548, %v1556
        %vm1560 = vcmask 1040384
        %v1561 = vsel %vm1560, %v1553, 0.0
        %v1562 = vsel %vm1560, %v1557, 0.0
        %v1563 = vadd.f32 %v1561, %v1562
        %1564 = vadd.xlane.f32.xlu0 %v1563
        %v1565 = vpop.xlane.xlu0 %1564
        %v1566 = vrot.slane %v1565, 4
        %v1567 = vadd.f32 %v1565, %v1566
        %v1568 = vrot.slane %v1567, 2
        %v1569 = vadd.f32 %v1567, %v1568
        %v1570 = vrot.slane %v1569, 1
        %v1571 = vadd.f32 %v1569, %v1570
        %s1572 = vtos %v1571
        %v1573 = vrcp.pop 256.0
        %s1574 = vtos %v1573
        %s1575 = smul.f32 %s1572, %s1574
        %s1576 = sadd.f32 %s1575, 1e-05
        %v1577 = vstv %s1576
        %v1578 = vlog2.pop %v1577
        %v1579 = vmul.f32 %v1578, 0.6931472
        %s1580 = vtos %v1579
        %s1581 = ssub.f32 0.0, %s1580
        %v1582 = vstv %s1581
        %vm1583 = vcmask 0
        %1584 = vst.msk [vmem:[%s231] sm:$0x1] %vm1583, %v1582
      $region40: #{tpu_custom_call.1} parent=31 // pred_fallthru
        _
      %p1585 = scmp.lt.s32.totalorder %s18, 1
      %s1586 = scalar_select %p1585, %s18, 1
      %s1587 = scalar_lea.vmem %s3, %s1586
      // Predicated region
      $region41: #{tpu_custom_call.1} parent=31 // pred_check
        %p1588 = pneg %p124
      $region42: #{tpu_custom_call.1} parent=31 // pred_check_branch
        %1590 = sbr.rel (%p1588) target = $region44
      $region43: #{tpu_custom_call.1} parent=31 // pred_region
        _
      $region44: #{tpu_custom_call.1} parent=31 // pred_fallthru
        _
    $region32: #{tpu_custom_call.1} parent=5 // pred_fallthru
      _
    %p1591 = scmp.le.s32.totalorder 2, %s9
    // Predicated region
    $region45: #{tpu_custom_call.1} parent=5 // pred_check
      %p1592 = pneg %p1591
    $region46: #{tpu_custom_call.1} parent=5 // pred_check_branch
      %1594 = sbr.rel (%p1592) target = $region48
    $region47: #{tpu_custom_call.1} parent=5 // pred_region
      %s1595 = ssub.s32 %s9, 2
      // Predicated region
      $region49: #{tpu_custom_call.1} parent=47 // pred_check
        %p1596 = pneg %p130
      $region50: #{tpu_custom_call.1} parent=47 // pred_check_branch
        %1598 = sbr.rel (%p1596) target = $region52
      $region51: #{tpu_custom_call.1} parent=47 // pred_region
        %p1599 = scmp.lt.s32.totalorder %s20, 1
        %s1600 = scalar_select %p1599, %s20, 1
        %s1601 = scalar_lea.vmem %s3, %s1600
      $region52: #{tpu_custom_call.1} parent=47 // pred_fallthru
        _
    $region48: #{tpu_custom_call.1} parent=5 // pred_fallthru
      _
  $region6: #{tpu_custom_call.1} parent=0 // loop_footer
    %s13 = sadd.s32 1, %s9
  $region7: #{tpu_custom_call.1} parent=0 // loop_footer_branch
    %8 = sbr.rel target = $region3
  $region8: #{tpu_custom_call.1} parent=0 // loop_exit
    _

</llo_original>
